<compile_context>
chip_gen: v5e
topology: v5e:2x2
jax: 0.10.0
libtpu: 0.0.40
codegen_flags: <defaults>
</compile_context>

<pallas_src>
import math
import numpy as np
import jax
import jax.numpy as jnp
from jax.experimental import pallas as pl
from jax.experimental.pallas import tpu as pltpu


# ----------------------------------------------------------------------------
# Parameter construction (deterministic, mirrors module __init__)
# ----------------------------------------------------------------------------
def _cal_freq_list(freq_init, frequency_num, max_radius, min_radius):
    if freq_init == 'geometric':
        log_timescale_increment = math.log(float(max_radius) / float(min_radius)) / (
            frequency_num * 1.0 - 1)
        timescales = min_radius * np.exp(
            np.arange(frequency_num).astype(float) * log_timescale_increment)
        freq_list = 1.0 / timescales
    else:
        # TODO(synk): 'random' freq_init (np.random) not supported in this
        # deterministic synthetic setup.
        raise ValueError("only 'geometric' supported in this synthetic setup")
    return freq_list


def _make_packed_weights(frequency_num, max_radius, min_radius, freq_init='geometric'):
    """Packed (8, L) projection matrix W with L = 6*frequency_num.

    For lane l: f = l // 6, k = l % 6, unit_vec = [uv1, uv1, uv2, uv2, uv3, uv3][k]
      W[0, l] = unit_vec[0] * freq[f]      (wx)
      W[1, l] = unit_vec[1] * freq[f]      (wy)
      W[2, l] = 0 if l even (sin lane) else pi/2 (cos lane; cos(x)=sin(x+pi/2))
      W[3:8]  = 0 padding so K == 8 (full sublane tile for the MXU)

    With a packed coord row c8 = [x, y, 1, 0, 0, 0, 0, 0]:
      (c8 @ W)[l] = <coord, unit_vec[k//2]> * freq[f] + phase[l]
    so sin(c8 @ W) reproduces the module's interleaved sin/cos layout.
    """
    freq_list = _cal_freq_list(freq_init, frequency_num, max_radius, min_radius)
    unit_vecs = np.asarray([
        [1.0, 0.0],
        [-0.5, math.sqrt(3) / 2.0],
        [-0.5, -math.sqrt(3) / 2.0],
    ])  # (3, 2)
    L = 6 * frequency_num
    lanes = np.arange(L)
    f_idx = lanes // 6
    k_idx = lanes % 6
    vec_idx = k_idx // 2                       # 0,0,1,1,2,2 pattern
    W = np.zeros((8, L), dtype=np.float32)
    W[0] = unit_vecs[vec_idx, 0] * freq_list[f_idx]
    W[1] = unit_vecs[vec_idx, 1] * freq_list[f_idx]
    W[2] = np.where(lanes % 2 == 0, 0.0, np.pi / 2.0)
    return W


# ----------------------------------------------------------------------------
# Pallas kernel: K=8 MXU projection + single sin per element (hot path)
# ----------------------------------------------------------------------------
def _grid_cell_kernel(c_ref, w_ref, out_ref):
    # Tiny K=8 matmul on the idle MXU fuses projection, frequency scaling and
    # the sin/cos phase bias; HIGHEST precision keeps the f32 angles exact.
    ang = jnp.dot(c_ref[...], w_ref[...],
                  preferred_element_type=jnp.float32,
                  precision=jax.lax.Precision.HIGHEST)   # (TM, L)
    out_ref[...] = jnp.sin(ang)


def theory_grid_cell_encode(coords, frequency_num=16, max_radius=10000,
                            min_radius=1000, freq_init='geometric'):
    """coords: (B, N, 2) array-like. Returns (B, N, 6*frequency_num) float32."""
    coords = jnp.asarray(coords, dtype=jnp.float32)
    B, N, coord_dim = coords.shape
    assert coord_dim == 2
    L = 6 * frequency_num

    W = jnp.asarray(
        _make_packed_weights(frequency_num, max_radius, min_radius, freq_init))

    R = B * N
    # Row-tile selection: as large as reasonable (amortizes ~0.35us/step
    # pipeline overhead on a writeback-bound op), capped at ceil(R/2) so the
    # grid has >= 2 "parallel" steps for v7x's two TensorCores.
    TM_MAX = 1024
    if R <= 8:
        TM = 8
    else:
        half_rows = (R + 1) // 2
        TM = min(TM_MAX, ((half_rows + 7) // 8) * 8)
    R_pad = ((R + TM - 1) // TM) * TM

    # Pack [x, y, 1, 0...0] so the constant phase row of W is added by the matmul.
    coords_flat = coords.reshape(R, 2)
    c8 = jnp.concatenate(
        [coords_flat,
         jnp.ones((R, 1), jnp.float32),
         jnp.zeros((R, 5), jnp.float32)], axis=1)
    if R_pad != R:
        c8 = jnp.pad(c8, ((0, R_pad - R), (0, 0)))   # pad rows give sin(0)=0, sliced off

    grid = (R_pad // TM,)
    cost = pl.CostEstimate(
        flops=2 * R_pad * 8 * L,
        transcendentals=R_pad * L,
        bytes_accessed=4 * (R_pad * 8 + 8 * L + R_pad * L))

    out = pl.pallas_call(
        _grid_cell_kernel,
        out_shape=jax.ShapeDtypeStruct((R_pad, L), jnp.float32),
        grid_spec=pltpu.PrefetchScalarGridSpec(
            num_scalar_prefetch=0,
            grid=grid,
            in_specs=[
                pl.BlockSpec((TM, 8), lambda i: (i, 0)),   # packed coords tile
                pl.BlockSpec((8, L), lambda i: (0, 0)),    # packed weights (broadcast)
            ],
            out_specs=pl.BlockSpec((TM, L), lambda i: (i, 0)),
        ),
        compiler_params=pltpu.CompilerParams(
            dimension_semantics=("parallel",)),
        cost_estimate=cost,
    )(c8, W)

    return out[:R].reshape(B, N, L)


# ----------------------------------------------------------------------------
# Pure numpy reference (mirrors the PyTorch module's make_input_embeds)
# ----------------------------------------------------------------------------
def _reference(coords_np, frequency_num=16, max_radius=10000, min_radius=1000,
               freq_init='geometric'):
    freq_list = _cal_freq_list(freq_init, frequency_num, max_radius, min_radius)
    freq_mat = np.repeat(np.expand_dims(freq_list, axis=1), 6, axis=1)
    unit_vec1 = np.asarray([1.0, 0.0])
    unit_vec2 = np.asarray([-0.5, math.sqrt(3) / 2.0])
    unit_vec3 = np.asarray([-0.5, -math.sqrt(3) / 2.0])
    coords_mat = np.asarray(coords_np).astype(float)
    B, N = coords_mat.shape[0], coords_mat.shape[1]
    a1 = np.expand_dims(np.matmul(coords_mat, unit_vec1), axis=-1)
    a2 = np.expand_dims(np.matmul(coords_mat, unit_vec2), axis=-1)
    a3 = np.expand_dims(np.matmul(coords_mat, unit_vec3), axis=-1)
    angle_mat = np.concatenate([a1, a1, a2, a2, a3, a3], axis=-1)
    angle_mat = np.expand_dims(angle_mat, axis=-2)
    angle_mat = np.repeat(angle_mat, frequency_num, axis=-2)
    angle_mat = angle_mat * freq_mat
    spr = np.reshape(angle_mat, (B, N, -1))
    spr[:, :, 0::2] = np.sin(spr[:, :, 0::2])
    spr[:, :, 1::2] = np.cos(spr[:, :, 1::2])
    return spr.astype(np.float32)


if __name__ == "__main__":
    key = jax.random.PRNGKey(0)
    B, N = 2, 64
    frequency_num = 16
    coords = jax.random.uniform(key, (B, N, 2), dtype=jnp.float32,
                                minval=-5000.0, maxval=5000.0)

    out = theory_grid_cell_encode(coords, frequency_num=frequency_num)
    out = jax.block_until_ready(out)

    ref = _reference(np.asarray(coords), frequency_num=frequency_num)
    assert out.shape == (B, N, 6 * frequency_num), out.shape
    np.testing.assert_allclose(np.asarray(out), ref, rtol=1e-4, atol=1e-4)

    print("KERNEL_OK")
</pallas_src>

<mosaic_0001>
module attributes {stable_mosaic.version = 11 : i64} {
  func.func @_grid_cell_kernel(%arg0: i32, %arg1: memref<64x8xf32, #tpu.memory_space<vmem>>, %arg2: memref<8x96xf32, #tpu.memory_space<vmem>>, %arg3: memref<64x96xf32, #tpu.memory_space<vmem>>) attributes {dimension_semantics = [#tpu.dimension_semantics<parallel>], iteration_bounds = array<i64: 2>, scalar_prefetch = 0 : i64, scratch_operands = 0 : i64, tpu.core_type = #tpu.core_type<tc>, window_params = [{transform_indices = @transform_0, window_bounds = array<i64: 64, 8>}, {pipeline_mode = #tpu.pipeline_mode<synchronous>, transform_indices = @transform_1, window_bounds = array<i64: 8, 96>}, {transform_indices = @transform_2, window_bounds = array<i64: 64, 96>}]} {
    %c0 = arith.constant 0 : index
    %c0_0 = arith.constant 0 : index
    %0 = vector.load %arg1[%c0, %c0_0] : memref<64x8xf32, #tpu.memory_space<vmem>>, vector<64x8xf32>
    %c0_1 = arith.constant 0 : index
    %c0_2 = arith.constant 0 : index
    %1 = vector.load %arg2[%c0_1, %c0_2] : memref<8x96xf32, #tpu.memory_space<vmem>>, vector<8x96xf32>
    %cst = arith.constant dense<0.000000e+00> : vector<64x96xf32>
    %2 = tpu.matmul %0, %1, %cst {dimension_numbers = #tpu.dot_dimension_numbers<[1], [0], [0], [1], [0, 0, 1, 1], [], []>, precision = #tpu.contract_precision<fp32>} : vector<64x8xf32>, vector<8x96xf32>, vector<64x96xf32> -> vector<64x96xf32>
    %3 = math.sin %2 : vector<64x96xf32>
    %c0_3 = arith.constant 0 : index
    %c0_4 = arith.constant 0 : index
    %4 = vector.load %arg3[%c0_3, %c0_4] : memref<64x96xf32, #tpu.memory_space<vmem>>, vector<64x96xf32>
    tpu.vector_store %arg3[%c0_3, %c0_4], %3 {strides = array<i32>} : memref<64x96xf32, #tpu.memory_space<vmem>>, vector<64x96xf32>,
    return
  }
  func.func @transform_0(%arg0: i32) -> (i32, i32) {
    %c0_i32 = arith.constant 0 : i32
    %c0_i32_0 = arith.constant 0 : i32
    return %arg0, %c0_i32 : i32, i32
  }
  func.func @transform_1(%arg0: i32) -> (i32, i32) {
    %c0_i32 = arith.constant 0 : i32
    %c0_i32_0 = arith.constant 0 : i32
    %c0_i32_1 = arith.constant 0 : i32
    return %c0_i32, %c0_i32_0 : i32, i32
  }
  func.func @transform_2(%arg0: i32) -> (i32, i32) {
    %c0_i32 = arith.constant 0 : i32
    %c0_i32_0 = arith.constant 0 : i32
    return %arg0, %c0_i32 : i32, i32
  }
}

</mosaic_0001>

<llo_original>
// kernel: tpu_custom_call.1
$region0: #{tpu_custom_call.1}
  #allocation0 [shape = 'u32[]', space=smem, size = 0x4, offset = 0x4, fixed_abs, tag = 'smem constant byte address 0x4 - core index']
  #allocation1 [shape = 'u32[72,128]{1,0:T(1,128)}', space=vmem, size = 0x9000, scoped, tag = 'internal scratch']
  %s0 = inlined_call_operand.vmem [shape: f32[128,8], index: 0, kind: input, shape index: {}]
  %s1 = inlined_call_operand.vmem [shape: f32[8,96], index: 1, kind: input, shape index: {}]
  %s2 = inlined_call_operand.vmem [shape: f32[128,96], index: 2, kind: output, shape index: {}]
  %s3 = sld [smem:[#allocation0]]
  $region41: #{tpu_custom_call.1} parent=0
    _
  %s5 = ssub.s32 1, %s3
  %s6 = scalar_select 0, %s5, %s3
  loop: start=0, step=1, limit=4
  $region2: #{tpu_custom_call.1} parent=0 // loop_pre_header
    _
  $region3: #{tpu_custom_call.1} parent=0 // loop_header
    %s8 = sphi 0, %s12
    %p9 = scmp.ge.s32.totalorder %s8, 4
    %s18 = sphi 0, %s20
    %s21 = sphi 0, %s18
    %s22 = sphi 0, %s21
    %s38 = sphi 0, %s22
    %s42 = sphi 0, %s42
    %s44 = sphi 0, %s42
    %s45 = sphi 0, %s44
    %s59 = sphi 0, %s45
    %s65 = sphi 0, %s67
    %s68 = sphi 0, %s65
    %s69 = sphi 0, %s68
    %s85 = sphi 0, %s69
  $region4: #{tpu_custom_call.1} parent=0 // loop_header_branch
    %11 = sbr.rel (%p9) target = $region8
  $region5: #{tpu_custom_call.1} parent=0 // loop_body
    %s13 = ssub.s32 %s8, 1
    %s14 = ssub.s32 %s8, 2
    %s15 = sadd.s32 %s8, 1
    %s16 = ssub.s32 %s8, %s15
    %p17 = scmp.eq.s32.totalorder %s16, 0
    %s19 = sadd.s32 %s18, 1
    %s20 = scalar_select %p17, %s18, %s19
    %p23 = pneg %p17
    %p24 = scmp.eq.s32.totalorder %s8, 1
    %p25 = por %p23, %p24
    %p26 = scmp.ne.s32.totalorder %s18, %s21
    %p27 = scmp.eq.s32.totalorder %s8, 0
    %p28 = por %p26, %p27
    %p29 = scmp.ne.s32.totalorder %s18, %s21
    %p30 = scmp.eq.s32.totalorder %s13, 1
    %p31 = por %p29, %p30
    %p32 = scmp.ne.s32.totalorder %s21, %s22
    %p33 = scmp.eq.s32.totalorder %s13, 0
    %p34 = por %p32, %p33
    %p35 = scmp.ne.s32.totalorder %s21, %s22
    %p36 = scmp.eq.s32.totalorder %s14, 1
    %p37 = por %p35, %p36
    %p39 = scmp.ne.s32.totalorder %s22, %s38
    %p40 = scmp.eq.s32.totalorder %s14, 0
    %p41 = por %p39, %p40
    %s43 = sadd.s32 %s42, 1
    %p46 = scmp.eq.s32.totalorder %s8, 1
    %p47 = scmp.ne.s32.totalorder %s42, %s44
    %p48 = scmp.eq.s32.totalorder %s8, 0
    %p49 = por %p47, %p48
    %p50 = scmp.ne.s32.totalorder %s42, %s44
    %p51 = scmp.eq.s32.totalorder %s13, 1
    %p52 = por %p50, %p51
    %p53 = scmp.ne.s32.totalorder %s44, %s45
    %p54 = scmp.eq.s32.totalorder %s13, 0
    %p55 = por %p53, %p54
    %p56 = scmp.ne.s32.totalorder %s44, %s45
    %p57 = scmp.eq.s32.totalorder %s14, 1
    %p58 = por %p56, %p57
    %p60 = scmp.ne.s32.totalorder %s45, %s59
    %p61 = scmp.eq.s32.totalorder %s14, 0
    %p62 = por %p60, %p61
    %s63 = ssub.s32 %s8, %s15
    %p64 = scmp.eq.s32.totalorder %s63, 0
    %s66 = sadd.s32 %s65, 1
    %s67 = scalar_select %p64, %s65, %s66
    %p70 = pneg %p64
    %p71 = scmp.eq.s32.totalorder %s8, 1
    %p72 = por %p70, %p71
    %p73 = scmp.ne.s32.totalorder %s65, %s68
    %p74 = scmp.eq.s32.totalorder %s8, 0
    %p75 = por %p73, %p74
    %p76 = scmp.ne.s32.totalorder %s65, %s68
    %p77 = scmp.eq.s32.totalorder %s13, 1
    %p78 = por %p76, %p77
    %p79 = scmp.ne.s32.totalorder %s68, %s69
    %p80 = scmp.eq.s32.totalorder %s13, 0
    %p81 = por %p79, %p80
    %p82 = scmp.ne.s32.totalorder %s68, %s69
    %p83 = scmp.eq.s32.totalorder %s14, 1
    %p84 = por %p82, %p83
    %p86 = scmp.ne.s32.totalorder %s69, %s85
    %p87 = scmp.eq.s32.totalorder %s14, 0
    %p88 = por %p86, %p87
    %p89 = scmp.le.s32.totalorder 1, %s8
    %p90 = scmp.lt.s32.totalorder %s8, 3
    %p91 = pnand %p89, %p90
    %p92 = pneg %p91
    // Predicated region
    $region9: #{tpu_custom_call.1} parent=5 // pred_check
      _
    $region10: #{tpu_custom_call.1} parent=5 // pred_check_branch
      %94 = sbr.rel (%p91) target = $region12
    $region11: #{tpu_custom_call.1} parent=5 // pred_region
      %s95 = ssub.s32 %s8, 1
      // Predicated region
      $region13: #{tpu_custom_call.1} parent=11 // pred_check
        %p96 = pneg %p55
      $region14: #{tpu_custom_call.1} parent=11 // pred_check_branch
        %98 = sbr.rel (%p96) target = $region16
      $region15: #{tpu_custom_call.1} parent=11 // pred_region
        _
      $region16: #{tpu_custom_call.1} parent=11 // pred_fallthru
        _
    $region12: #{tpu_custom_call.1} parent=5 // pred_fallthru
      _
    %p99 = scmp.lt.s32.totalorder %s8, 2
    // Predicated region
    $region17: #{tpu_custom_call.1} parent=5 // pred_check
      %p100 = pneg %p99
    $region18: #{tpu_custom_call.1} parent=5 // pred_check_branch
      %102 = sbr.rel (%p100) target = $region20
    $region19: #{tpu_custom_call.1} parent=5 // pred_region
      // Predicated region
      $region21: #{tpu_custom_call.1} parent=19 // pred_check
        %p103 = pneg %p28
      $region22: #{tpu_custom_call.1} parent=19 // pred_check_branch
        %105 = sbr.rel (%p103) target = $region24
      $region23: #{tpu_custom_call.1} parent=19 // pred_region
        %s106 = smul.u32 8, %s8
        %p107 = scmp.lt.s32.totalorder %s106, 15
        %s108 = scalar_select %p107, %s106, 15
        %s109 = smul.addr %s108, 8
        %s110 = scalar_lea.vmem %s0, %s109
        %s111 = smul.u32 8, %s8
      $region24: #{tpu_custom_call.1} parent=19 // pred_fallthru
        _
    $region20: #{tpu_custom_call.1} parent=5 // pred_fallthru
      _
    %p112 = scmp.le.s32.totalorder 1, %s8
    %p113 = scmp.lt.s32.totalorder %s8, 3
    %p114 = pnand %p112, %p113
    %p115 = pneg %p114
    // Predicated region
    $region25: #{tpu_custom_call.1} parent=5 // pred_check
      _
    $region26: #{tpu_custom_call.1} parent=5 // pred_check_branch
      %117 = sbr.rel (%p114) target = $region28
    $region27: #{tpu_custom_call.1} parent=5 // pred_region
      %s118 = ssub.s32 %s8, 1
      %s119 = smul.u32 8, %s13
      %p120 = scmp.lt.s32.totalorder %s119, 15
      %s121 = scalar_select %p120, %s119, 15
      %s122 = smul.addr %s121, 8
      %s123 = scalar_lea.vmem %s0, %s122
      %p124 = pneg %p34
      %p125 = pneg %p31
      %p126 = pneg %p55
      %p127 = pneg %p52
      %p128 = pneg %p81
      %p129 = pneg %p78
      %s130 = smul.u32 8, %s13
      %p131 = scmp.lt.s32.totalorder %s130, 15
      %s132 = scalar_select %p131, %s130, 15
      %s133 = smul.addr %s132, 8
      %s134 = scalar_lea.vmem %s2, %s133
      %s135 = smul.u32 8, %s13
      %p136 = scmp.lt.s32.totalorder %s135, 15
      %s137 = scalar_select %p136, %s135, 15
      %s138 = smul.addr %s137, 8
      %s139 = scalar_lea.vmem %s0, %s138
      %s140 = smul.u32 8, %s13
      %s141 = smul.u32 8, %s13
      %p142 = scmp.lt.s32.totalorder %s141, 15
      %s143 = scalar_select %p142, %s141, 15
      %s144 = smul.addr %s143, 8
      %s145 = scalar_lea.vmem %s2, %s144
      %s146 = smul.u32 8, %s13
      %v147 = vld [vmem:[%s139] sm:$0xff]
      %v148 = vld [vmem:[%s139 + $0x8] sm:$0xff]
      %v149 = vld [vmem:[%s139 + $0x10] sm:$0xff]
      %v150 = vld [vmem:[%s139 + $0x18] sm:$0xff]
      %v151 = vld [vmem:[%s139 + $0x20] sm:$0xff]
      %v152 = vld [vmem:[%s139 + $0x28] sm:$0xff]
      %v153 = vld [vmem:[%s139 + $0x30] sm:$0xff]
      %v154 = vld [vmem:[%s139 + $0x38] sm:$0xff]
      %v155 = vld [vmem:[%s1] sm:$0xff]
      %vm156 = vcmask 64512
      %v158 = vsel %vm156, %v147, 0
      %v161 = vsel %vm156, %v148, 0
      %v164 = vsel %vm156, %v149, 0
      %v167 = vsel %vm156, %v150, 0
      %v170 = vsel %vm156, %v151, 0
      %v173 = vsel %vm156, %v152, 0
      %v176 = vsel %vm156, %v153, 0
      %v179 = vsel %vm156, %v154, 0
      %181 = vmatpush.msra.mxu0 0.0
      %182 = vmatpush.msra.mxu0 0.0
      %183 = vmatpush.msra.mxu0 0.0
      %184 = vmatpush.msra.mxu0 0.0
      %185 = vmatpush.msra.mxu0 0.0
      %186 = vmatpush.msra.mxu0 0.0
      %187 = vmatpush.msra.mxu0 0.0
      %188 = vmatpush.msra.mxu0 0.0
      %189 = vmatpush.msra.mxu0 0.0
      %190 = vmatpush.msra.mxu0 0.0
      %191 = vmatpush.msra.mxu0 0.0
      %192 = vmatpush.msra.mxu0 0.0
      %193 = vmatpush.msra.mxu0 0.0
      %194 = vmatpush.msra.mxu0 0.0
      %195 = vmatpush.msra.mxu0 0.0
      %v196 = vand.u32 %v155, 4294901760
      %197 = vmatpush.msra.mxu0 %v196
      %v198 = vand.u32 %v158, 4294901760
      %v199 = vsub.f32 %v158, %v198
      %v200 = vand.u32 %v199, 4294901760
      %v201 = vsub.f32 %v199, %v200
      %v202 = vand.u32 %v201, 4294901760
      %203 = vmatmul.f32.gmra.mxu0 %v202
      %v204 = vpop.f32.mrf.mxu0
      %v205 = vadd.f32 0.0, %v204
      %v206 = vand.u32 %v161, 4294901760
      %v207 = vsub.f32 %v161, %v206
      %v208 = vand.u32 %v207, 4294901760
      %v209 = vsub.f32 %v207, %v208
      %v210 = vand.u32 %v209, 4294901760
      %211 = vmatmul.f32.gmra.mxu0 %v210
      %v212 = vpop.f32.mrf.mxu0
      %v213 = vadd.f32 0.0, %v212
      %v214 = vand.u32 %v164, 4294901760
      %v215 = vsub.f32 %v164, %v214
      %v216 = vand.u32 %v215, 4294901760
      %v217 = vsub.f32 %v215, %v216
      %v218 = vand.u32 %v217, 4294901760
      %219 = vmatmul.f32.gmra.mxu0 %v218
      %v220 = vpop.f32.mrf.mxu0
      %v221 = vadd.f32 0.0, %v220
      %v222 = vand.u32 %v167, 4294901760
      %v223 = vsub.f32 %v167, %v222
      %v224 = vand.u32 %v223, 4294901760
      %v225 = vsub.f32 %v223, %v224
      %v226 = vand.u32 %v225, 4294901760
      %227 = vmatmul.f32.gmra.mxu0 %v226
      %v228 = vpop.f32.mrf.mxu0
      %v229 = vadd.f32 0.0, %v228
      %v230 = vand.u32 %v170, 4294901760
      %v231 = vsub.f32 %v170, %v230
      %v232 = vand.u32 %v231, 4294901760
      %v233 = vsub.f32 %v231, %v232
      %v234 = vand.u32 %v233, 4294901760
      %235 = vmatmul.f32.gmra.mxu0 %v234
      %v236 = vpop.f32.mrf.mxu0
      %v237 = vadd.f32 0.0, %v236
      %v238 = vand.u32 %v173, 4294901760
      %v239 = vsub.f32 %v173, %v238
      %v240 = vand.u32 %v239, 4294901760
      %v241 = vsub.f32 %v239, %v240
      %v242 = vand.u32 %v241, 4294901760
      %243 = vmatmul.f32.gmra.mxu0 %v242
      %v244 = vpop.f32.mrf.mxu0
      %v245 = vadd.f32 0.0, %v244
      %v246 = vand.u32 %v176, 4294901760
      %v247 = vsub.f32 %v176, %v246
      %v248 = vand.u32 %v247, 4294901760
      %v249 = vsub.f32 %v247, %v248
      %v250 = vand.u32 %v249, 4294901760
      %251 = vmatmul.f32.gmra.mxu0 %v250
      %v252 = vpop.f32.mrf.mxu0
      %v253 = vadd.f32 0.0, %v252
      %v254 = vand.u32 %v179, 4294901760
      %v255 = vsub.f32 %v179, %v254
      %v256 = vand.u32 %v255, 4294901760
      %v257 = vsub.f32 %v255, %v256
      %v258 = vand.u32 %v257, 4294901760
      %259 = vmatmul.f32.gmra.mxu0 %v258
      %v260 = vpop.f32.mrf.mxu0
      %v261 = vadd.f32 0.0, %v260
      %262 = vdwg.mxu0
      %263 = vmatpush.msra.mxu0 0.0
      %264 = vmatpush.msra.mxu0 0.0
      %265 = vmatpush.msra.mxu0 0.0
      %266 = vmatpush.msra.mxu0 0.0
      %267 = vmatpush.msra.mxu0 0.0
      %268 = vmatpush.msra.mxu0 0.0
      %269 = vmatpush.msra.mxu0 0.0
      %270 = vmatpush.msra.mxu0 0.0
      %271 = vmatpush.msra.mxu0 0.0
      %272 = vmatpush.msra.mxu0 0.0
      %273 = vmatpush.msra.mxu0 0.0
      %274 = vmatpush.msra.mxu0 0.0
      %275 = vmatpush.msra.mxu0 0.0
      %276 = vmatpush.msra.mxu0 0.0
      %277 = vmatpush.msra.mxu0 0.0
      %v278 = vand.u32 %v155, 4294901760
      %v279 = vsub.f32 %v155, %v278
      %v280 = vand.u32 %v279, 4294901760
      %v281 = vsub.f32 %v279, %v280
      %v282 = vand.u32 %v281, 4294901760
      %283 = vmatpush.msra.mxu0 %v282
      %v284 = vand.u32 %v158, 4294901760
      %285 = vmatmul.f32.gmra.mxu0 %v284
      %v286 = vpop.f32.mrf.mxu0
      %v287 = vadd.f32 %v205, %v286
      %v288 = vand.u32 %v161, 4294901760
      %289 = vmatmul.f32.gmra.mxu0 %v288
      %v290 = vpop.f32.mrf.mxu0
      %v291 = vadd.f32 %v213, %v290
      %v292 = vand.u32 %v164, 4294901760
      %293 = vmatmul.f32.gmra.mxu0 %v292
      %v294 = vpop.f32.mrf.mxu0
      %v295 = vadd.f32 %v221, %v294
      %v296 = vand.u32 %v167, 4294901760
      %297 = vmatmul.f32.gmra.mxu0 %v296
      %v298 = vpop.f32.mrf.mxu0
      %v299 = vadd.f32 %v229, %v298
      %v300 = vand.u32 %v170, 4294901760
      %301 = vmatmul.f32.gmra.mxu0 %v300
      %v302 = vpop.f32.mrf.mxu0
      %v303 = vadd.f32 %v237, %v302
      %v304 = vand.u32 %v173, 4294901760
      %305 = vmatmul.f32.gmra.mxu0 %v304
      %v306 = vpop.f32.mrf.mxu0
      %v307 = vadd.f32 %v245, %v306
      %v308 = vand.u32 %v176, 4294901760
      %309 = vmatmul.f32.gmra.mxu0 %v308
      %v310 = vpop.f32.mrf.mxu0
      %v311 = vadd.f32 %v253, %v310
      %v312 = vand.u32 %v179, 4294901760
      %313 = vmatmul.f32.gmra.mxu0 %v312
      %v314 = vpop.f32.mrf.mxu0
      %v315 = vadd.f32 %v261, %v314
      %316 = vdwg.mxu0
      %317 = vmatpush.msra.mxu0 0.0
      %318 = vmatpush.msra.mxu0 0.0
      %319 = vmatpush.msra.mxu0 0.0
      %320 = vmatpush.msra.mxu0 0.0
      %321 = vmatpush.msra.mxu0 0.0
      %322 = vmatpush.msra.mxu0 0.0
      %323 = vmatpush.msra.mxu0 0.0
      %324 = vmatpush.msra.mxu0 0.0
      %325 = vmatpush.msra.mxu0 0.0
      %326 = vmatpush.msra.mxu0 0.0
      %327 = vmatpush.msra.mxu0 0.0
      %328 = vmatpush.msra.mxu0 0.0
      %329 = vmatpush.msra.mxu0 0.0
      %330 = vmatpush.msra.mxu0 0.0
      %331 = vmatpush.msra.mxu0 0.0
      %v332 = vand.u32 %v155, 4294901760
      %v333 = vsub.f32 %v155, %v332
      %334 = vmatpush.msra.mxu0 %v333
      %v335 = vand.u32 %v158, 4294901760
      %v336 = vsub.f32 %v158, %v335
      %337 = vmatmul.f32.gmra.mxu0 %v336
      %v338 = vpop.f32.mrf.mxu0
      %v339 = vadd.f32 %v287, %v338
      %v340 = vand.u32 %v161, 4294901760
      %v341 = vsub.f32 %v161, %v340
      %342 = vmatmul.f32.gmra.mxu0 %v341
      %v343 = vpop.f32.mrf.mxu0
      %v344 = vadd.f32 %v291, %v343
      %v345 = vand.u32 %v164, 4294901760
      %v346 = vsub.f32 %v164, %v345
      %347 = vmatmul.f32.gmra.mxu0 %v346
      %v348 = vpop.f32.mrf.mxu0
      %v349 = vadd.f32 %v295, %v348
      %v350 = vand.u32 %v167, 4294901760
      %v351 = vsub.f32 %v167, %v350
      %352 = vmatmul.f32.gmra.mxu0 %v351
      %v353 = vpop.f32.mrf.mxu0
      %v354 = vadd.f32 %v299, %v353
      %v355 = vand.u32 %v170, 4294901760
      %v356 = vsub.f32 %v170, %v355
      %357 = vmatmul.f32.gmra.mxu0 %v356
      %v358 = vpop.f32.mrf.mxu0
      %v359 = vadd.f32 %v303, %v358
      %v360 = vand.u32 %v173, 4294901760
      %v361 = vsub.f32 %v173, %v360
      %362 = vmatmul.f32.gmra.mxu0 %v361
      %v363 = vpop.f32.mrf.mxu0
      %v364 = vadd.f32 %v307, %v363
      %v365 = vand.u32 %v176, 4294901760
      %v366 = vsub.f32 %v176, %v365
      %367 = vmatmul.f32.gmra.mxu0 %v366
      %v368 = vpop.f32.mrf.mxu0
      %v369 = vadd.f32 %v311, %v368
      %v370 = vand.u32 %v179, 4294901760
      %v371 = vsub.f32 %v179, %v370
      %372 = vmatmul.f32.gmra.mxu0 %v371
      %v373 = vpop.f32.mrf.mxu0
      %v374 = vadd.f32 %v315, %v373
      %375 = vdwg.mxu0
      %376 = vmatpush.msra.mxu0 0.0
      %377 = vmatpush.msra.mxu0 0.0
      %378 = vmatpush.msra.mxu0 0.0
      %379 = vmatpush.msra.mxu0 0.0
      %380 = vmatpush.msra.mxu0 0.0
      %381 = vmatpush.msra.mxu0 0.0
      %382 = vmatpush.msra.mxu0 0.0
      %383 = vmatpush.msra.mxu0 0.0
      %384 = vmatpush.msra.mxu0 0.0
      %385 = vmatpush.msra.mxu0 0.0
      %386 = vmatpush.msra.mxu0 0.0
      %387 = vmatpush.msra.mxu0 0.0
      %388 = vmatpush.msra.mxu0 0.0
      %389 = vmatpush.msra.mxu0 0.0
      %390 = vmatpush.msra.mxu0 0.0
      %v391 = vand.u32 %v155, 4294901760
      %392 = vmatpush.msra.mxu0 %v391
      %v393 = vand.u32 %v158, 4294901760
      %v394 = vsub.f32 %v158, %v393
      %v395 = vand.u32 %v394, 4294901760
      %396 = vmatmul.f32.gmra.mxu0 %v395
      %v397 = vpop.f32.mrf.mxu0
      %v398 = vadd.f32 %v339, %v397
      %v399 = vand.u32 %v161, 4294901760
      %v400 = vsub.f32 %v161, %v399
      %v401 = vand.u32 %v400, 4294901760
      %402 = vmatmul.f32.gmra.mxu0 %v401
      %v403 = vpop.f32.mrf.mxu0
      %v404 = vadd.f32 %v344, %v403
      %v405 = vand.u32 %v164, 4294901760
      %v406 = vsub.f32 %v164, %v405
      %v407 = vand.u32 %v406, 4294901760
      %408 = vmatmul.f32.gmra.mxu0 %v407
      %v409 = vpop.f32.mrf.mxu0
      %v410 = vadd.f32 %v349, %v409
      %v411 = vand.u32 %v167, 4294901760
      %v412 = vsub.f32 %v167, %v411
      %v413 = vand.u32 %v412, 4294901760
      %414 = vmatmul.f32.gmra.mxu0 %v413
      %v415 = vpop.f32.mrf.mxu0
      %v416 = vadd.f32 %v354, %v415
      %v417 = vand.u32 %v170, 4294901760
      %v418 = vsub.f32 %v170, %v417
      %v419 = vand.u32 %v418, 4294901760
      %420 = vmatmul.f32.gmra.mxu0 %v419
      %v421 = vpop.f32.mrf.mxu0
      %v422 = vadd.f32 %v359, %v421
      %v423 = vand.u32 %v173, 4294901760
      %v424 = vsub.f32 %v173, %v423
      %v425 = vand.u32 %v424, 4294901760
      %426 = vmatmul.f32.gmra.mxu0 %v425
      %v427 = vpop.f32.mrf.mxu0
      %v428 = vadd.f32 %v364, %v427
      %v429 = vand.u32 %v176, 4294901760
      %v430 = vsub.f32 %v176, %v429
      %v431 = vand.u32 %v430, 4294901760
      %432 = vmatmul.f32.gmra.mxu0 %v431
      %v433 = vpop.f32.mrf.mxu0
      %v434 = vadd.f32 %v369, %v433
      %v435 = vand.u32 %v179, 4294901760
      %v436 = vsub.f32 %v179, %v435
      %v437 = vand.u32 %v436, 4294901760
      %438 = vmatmul.f32.gmra.mxu0 %v437
      %v439 = vpop.f32.mrf.mxu0
      %v440 = vadd.f32 %v374, %v439
      %441 = vdwg.mxu0
      %442 = vmatpush.msra.mxu0 0.0
      %443 = vmatpush.msra.mxu0 0.0
      %444 = vmatpush.msra.mxu0 0.0
      %445 = vmatpush.msra.mxu0 0.0
      %446 = vmatpush.msra.mxu0 0.0
      %447 = vmatpush.msra.mxu0 0.0
      %448 = vmatpush.msra.mxu0 0.0
      %449 = vmatpush.msra.mxu0 0.0
      %450 = vmatpush.msra.mxu0 0.0
      %451 = vmatpush.msra.mxu0 0.0
      %452 = vmatpush.msra.mxu0 0.0
      %453 = vmatpush.msra.mxu0 0.0
      %454 = vmatpush.msra.mxu0 0.0
      %455 = vmatpush.msra.mxu0 0.0
      %456 = vmatpush.msra.mxu0 0.0
      %v457 = vand.u32 %v155, 4294901760
      %v458 = vsub.f32 %v155, %v457
      %v459 = vand.u32 %v458, 4294901760
      %460 = vmatpush.msra.mxu0 %v459
      %v461 = vand.u32 %v158, 4294901760
      %462 = vmatmul.f32.gmra.mxu0 %v461
      %v463 = vpop.f32.mrf.mxu0
      %v464 = vadd.f32 %v398, %v463
      %v465 = vand.u32 %v161, 4294901760
      %466 = vmatmul.f32.gmra.mxu0 %v465
      %v467 = vpop.f32.mrf.mxu0
      %v468 = vadd.f32 %v404, %v467
      %v469 = vand.u32 %v164, 4294901760
      %470 = vmatmul.f32.gmra.mxu0 %v469
      %v471 = vpop.f32.mrf.mxu0
      %v472 = vadd.f32 %v410, %v471
      %v473 = vand.u32 %v167, 4294901760
      %474 = vmatmul.f32.gmra.mxu0 %v473
      %v475 = vpop.f32.mrf.mxu0
      %v476 = vadd.f32 %v416, %v475
      %v477 = vand.u32 %v170, 4294901760
      %478 = vmatmul.f32.gmra.mxu0 %v477
      %v479 = vpop.f32.mrf.mxu0
      %v480 = vadd.f32 %v422, %v479
      %v481 = vand.u32 %v173, 4294901760
      %482 = vmatmul.f32.gmra.mxu0 %v481
      %v483 = vpop.f32.mrf.mxu0
      %v484 = vadd.f32 %v428, %v483
      %v485 = vand.u32 %v176, 4294901760
      %486 = vmatmul.f32.gmra.mxu0 %v485
      %v487 = vpop.f32.mrf.mxu0
      %v488 = vadd.f32 %v434, %v487
      %v489 = vand.u32 %v179, 4294901760
      %490 = vmatmul.f32.gmra.mxu0 %v489
      %v491 = vpop.f32.mrf.mxu0
      %v492 = vadd.f32 %v440, %v491
      %493 = vdwg.mxu0
      %494 = vmatpush.msra.mxu0 0.0
      %495 = vmatpush.msra.mxu0 0.0
      %496 = vmatpush.msra.mxu0 0.0
      %497 = vmatpush.msra.mxu0 0.0
      %498 = vmatpush.msra.mxu0 0.0
      %499 = vmatpush.msra.mxu0 0.0
      %500 = vmatpush.msra.mxu0 0.0
      %501 = vmatpush.msra.mxu0 0.0
      %502 = vmatpush.msra.mxu0 0.0
      %503 = vmatpush.msra.mxu0 0.0
      %504 = vmatpush.msra.mxu0 0.0
      %505 = vmatpush.msra.mxu0 0.0
      %506 = vmatpush.msra.mxu0 0.0
      %507 = vmatpush.msra.mxu0 0.0
      %508 = vmatpush.msra.mxu0 0.0
      %v509 = vand.u32 %v155, 4294901760
      %510 = vmatpush.msra.mxu0 %v509
      %v511 = vand.u32 %v158, 4294901760
      %512 = vmatmul.f32.gmra.mxu0 %v511
      %v513 = vpop.f32.mrf.mxu0
      %v514 = vadd.f32 %v464, %v513
      %v515 = vand.u32 %v161, 4294901760
      %516 = vmatmul.f32.gmra.mxu0 %v515
      %v517 = vpop.f32.mrf.mxu0
      %v518 = vadd.f32 %v468, %v517
      %v519 = vand.u32 %v164, 4294901760
      %520 = vmatmul.f32.gmra.mxu0 %v519
      %v521 = vpop.f32.mrf.mxu0
      %v522 = vadd.f32 %v472, %v521
      %v523 = vand.u32 %v167, 4294901760
      %524 = vmatmul.f32.gmra.mxu0 %v523
      %v525 = vpop.f32.mrf.mxu0
      %v526 = vadd.f32 %v476, %v525
      %v527 = vand.u32 %v170, 4294901760
      %528 = vmatmul.f32.gmra.mxu0 %v527
      %v529 = vpop.f32.mrf.mxu0
      %v530 = vadd.f32 %v480, %v529
      %v531 = vand.u32 %v173, 4294901760
      %532 = vmatmul.f32.gmra.mxu0 %v531
      %v533 = vpop.f32.mrf.mxu0
      %v534 = vadd.f32 %v484, %v533
      %v535 = vand.u32 %v176, 4294901760
      %536 = vmatmul.f32.gmra.mxu0 %v535
      %v537 = vpop.f32.mrf.mxu0
      %v538 = vadd.f32 %v488, %v537
      %v539 = vand.u32 %v179, 4294901760
      %540 = vmatmul.f32.gmra.mxu0 %v539
      %v541 = vpop.f32.mrf.mxu0
      %v542 = vadd.f32 %v492, %v541
      %543 = vdwg.mxu0
      %v544 = vand.u32 2147483647, %v514
      %vm545 = vcmp.le.f32.partialorder %v544, 0.7853982
      %vm546 = vcmp.lt.s32.totalorder %v514, 0
      %v547 = vand.u32 %v514, 2139095040
      %v548 = vshrl.u32 %v547, 23
      %v549 = vsub.s32 %v548, 127
      %v550 = vand.u32 2147483647, %v514
      %v551 = vand.u32 %v550, 8388607
      %v552 = vor.u32 %v551, 8388608
      %v553 = vsub.s32 0, %v552
      %v554 = vadd.s32 %v549, 1
      %vm555 = vcmp.gt.s32.totalorder %v554, 0
      %v556 = vsel %vm555, %v554, 0
      %v557 = vshrl.u32 %v556, 5
      %v558 = vand.u32 %v556, 31
      %v559 = vsub.s32 32, %v558
      %v560 = vshrl.u32 683565275, %v559
      %v561 = vshll.u32 683565275, %v558
      %v562 = vshrl.u32 2475754826, %v559
      %v563 = vor.u32 %v561, %v562
      %v564 = vshll.u32 2475754826, %v558
      %v565 = vshrl.u32 2131351028, %v559
      %v566 = vor.u32 %v564, %v565
      %v567 = vshll.u32 2131351028, %v558
      %v568 = vshrl.u32 2102212464, %v559
      %v569 = vor.u32 %v567, %v568
      %v570 = vshll.u32 2102212464, %v558
      %v571 = vshrl.u32 920167782, %v559
      %v572 = vor.u32 %v570, %v571
      %v573 = vshll.u32 920167782, %v558
      %v574 = vshrl.u32 1326507024, %v559
      %v575 = vor.u32 %v573, %v574
      %vm576 = vcmp.lt.s32.totalorder %v557, 1
      %vm577 = vcmp.lt.s32.totalorder %v557, 2
      %vm578 = vcmp.lt.s32.totalorder %v557, 3
      %vm579 = vcmp.lt.s32.totalorder %v557, 4
      %v580 = vsel %vm576, %v560, %v563
      %v581 = vsel %vm579, %v569, 2102212464
      %v582 = vsel %vm578, %v566, %v581
      %v583 = vsel %vm577, %v580, %v582
      %v584 = vsel %vm576, %v563, %v566
      %v585 = vsel %vm579, %v572, 920167782
      %v586 = vsel %vm578, %v569, %v585
      %v587 = vsel %vm577, %v584, %v586
      %v588 = vsel %vm576, %v566, %v569
      %v589 = vsel %vm579, %v575, 1326507024
      %v590 = vsel %vm578, %v572, %v589
      %v591 = vsel %vm577, %v588, %v590
      %v592 = vshll.u32 %v552, 8
      %v593 = vand.u32 %v592, 65535
      %v594 = vshrl.u32 %v592, 16
      %v595 = vand.u32 %v591, 65535
      %v596 = vshrl.u32 %v591, 16
      %v597 = vmul.u32 %v593, %v595
      %v598 = vmul.u32 %v593, %v596
      %v599 = vmul.u32 %v594, %v595
      %v600 = vmul.u32 %v594, %v596
      %v601 = vshll.u32 %v598, 16
      %v602 = vshrl.u32 %v598, 16
      %v603 = vshll.u32 %v599, 16
      %v604 = vshrl.u32 %v599, 16
      %vm605 = vc.u32 %v597, %v601
      %v606 = vsel %vm605, 1, 0
      %v607 = vadd.s32 %v597, %v601
      %v608 = vadd.s32 %v600, %v606
      %vm609 = vc.u32 %v607, %v603
      %v610 = vsel %vm609, 1, 0
      %v611 = vadd.s32 %v607, %v603
      %v612 = vadd.s32 %v608, %v610
      %v613 = vadd.s32 %v612, %v602
      %v614 = vadd.s32 %v613, %v604
      %v615 = vand.u32 %v592, 65535
      %v616 = vshrl.u32 %v592, 16
      %v617 = vand.u32 %v587, 65535
      %v618 = vshrl.u32 %v587, 16
      %v619 = vmul.u32 %v615, %v617
      %v620 = vmul.u32 %v615, %v618
      %v621 = vmul.u32 %v616, %v617
      %v622 = vmul.u32 %v616, %v618
      %v623 = vshll.u32 %v620, 16
      %v624 = vshrl.u32 %v620, 16
      %v625 = vshll.u32 %v621, 16
      %v626 = vshrl.u32 %v621, 16
      %vm627 = vc.u32 %v619, %v623
      %v628 = vsel %vm627, 1, 0
      %v629 = vadd.s32 %v619, %v623
      %v630 = vadd.s32 %v622, %v628
      %vm631 = vc.u32 %v629, %v625
      %v632 = vsel %vm631, 1, 0
      %v633 = vadd.s32 %v629, %v625
      %v634 = vadd.s32 %v630, %v632
      %v635 = vadd.s32 %v634, %v624
      %v636 = vadd.s32 %v635, %v626
      %v637 = vmul.u32 %v592, %v583
      %v638 = vadd.s32 %v614, %v633
      %vm639 = vc.u32 %v614, %v633
      %v640 = vadd.s32 %v636, 1
      %v641 = vsel %vm639, %v640, %v636
      %v642 = vadd.s32 %v637, %v641
      %v643 = vadd.s32 %v642, 536870912
      %v644 = vshrl.u32 %v643, 30
      %v645 = vshll.u32 %v644, 30
      %v646 = vsub.s32 %v642, %v645
      %vm647 = vcmp.lt.s32.totalorder %v646, 0
      %v648 = vsub.s32 0, %v646
      %v649 = vsel %vm647, %v648, %v646
      %v650 = vclz %v649
      %v651 = vsub.s32 %v650, 2
      %vm652 = vcmp.gt.s32.totalorder 0, %v651
      %v653 = vsel %vm652, 0, %v651
      %v654 = vsub.s32 32, %v653
      %v655 = vshll.u32 %v646, %v653
      %v656 = vshrl.u32 %v638, %v654
      %v657 = vor.u32 %v655, %v656
      %v658 = vsub.s32 4294967266, %v653
      %v659 = vadd.s32 %v658, 127
      %v660 = vshll.u32 %v659, 23
      %v661 = vor.u32 4788187, %v660
      %v662 = vand.u32 2147483647, %v661
      %v664 = vcvt.s32.f32 %v657
      %v665 = vmul.f32 %v664, %v662
      %v666 = vxor.u32 %v665, 2147483648
      %v667 = vsel %vm546, %v666, %v665
      %v668 = vsub.s32 4, %v644
      %v669 = vsel %vm546, %v668, %v644
      %v670 = vsel %vm545, %v514, %v667
      %v671 = vsel %vm545, 0, %v669
      %v672 = vmul.f32 %v670, %v670
      %v673 = vmul.f32 %v672, -0.001358992
      %v674 = vadd.f32 %v673, 0.041655596
      %v675 = vmul.f32 %v672, %v674
      %v676 = vadd.f32 %v675, -0.4999988
      %v677 = vmul.f32 %v672, %v676
      %v678 = vadd.f32 1.0, %v677
      %v679 = vmul.f32 %v670, %v670
      %v680 = vmul.f32 %v679, -0.00019511016
      %v681 = vadd.f32 %v680, 0.008332121
      %v682 = vmul.f32 %v679, %v681
      %v683 = vadd.f32 %v682, -0.16666654
      %v684 = vmul.f32 %v679, %v683
      %v685 = vadd.f32 %v684, 1.0
      %v686 = vmul.f32 %v685, %v670
      %vm687 = vweird.f32 %v514
      %v688 = vadd.s32 %v671, 3
      %v689 = vand.u32 %v688, 3
      %vm690 = vcmp.lt.s32.totalorder %v689, 2
      %vm691 = vcmp.eq.s32.totalorder %v689, 0
      %v692 = vxor.u32 %v686, 2147483648
      %v693 = vsel %vm691, %v678, %v692
      %vm694 = vcmp.eq.s32.totalorder %v689, 2
      %v695 = vxor.u32 %v678, 2147483648
      %v696 = vsel %vm694, %v695, %v686
      %v697 = vsel %vm690, %v693, %v696
      %v698 = vsel %vm687, nan, %v697
      %v699 = vand.u32 2147483647, %v518
      %vm700 = vcmp.le.f32.partialorder %v699, 0.7853982
      %vm701 = vcmp.lt.s32.totalorder %v518, 0
      %v702 = vand.u32 %v518, 2139095040
      %v703 = vshrl.u32 %v702, 23
      %v704 = vsub.s32 %v703, 127
      %v705 = vand.u32 2147483647, %v518
      %v706 = vand.u32 %v705, 8388607
      %v707 = vor.u32 %v706, 8388608
      %v708 = vsub.s32 0, %v707
      %v709 = vadd.s32 %v704, 1
      %vm710 = vcmp.gt.s32.totalorder %v709, 0
      %v711 = vsel %vm710, %v709, 0
      %v712 = vshrl.u32 %v711, 5
      %v713 = vand.u32 %v711, 31
      %v714 = vsub.s32 32, %v713
      %v715 = vshrl.u32 683565275, %v714
      %v716 = vshll.u32 683565275, %v713
      %v717 = vshrl.u32 2475754826, %v714
      %v718 = vor.u32 %v716, %v717
      %v719 = vshll.u32 2475754826, %v713
      %v720 = vshrl.u32 2131351028, %v714
      %v721 = vor.u32 %v719, %v720
      %v722 = vshll.u32 2131351028, %v713
      %v723 = vshrl.u32 2102212464, %v714
      %v724 = vor.u32 %v722, %v723
      %v725 = vshll.u32 2102212464, %v713
      %v726 = vshrl.u32 920167782, %v714
      %v727 = vor.u32 %v725, %v726
      %v728 = vshll.u32 920167782, %v713
      %v729 = vshrl.u32 1326507024, %v714
      %v730 = vor.u32 %v728, %v729
      %vm731 = vcmp.lt.s32.totalorder %v712, 1
      %vm732 = vcmp.lt.s32.totalorder %v712, 2
      %vm733 = vcmp.lt.s32.totalorder %v712, 3
      %vm734 = vcmp.lt.s32.totalorder %v712, 4
      %v735 = vsel %vm731, %v715, %v718
      %v736 = vsel %vm734, %v724, 2102212464
      %v737 = vsel %vm733, %v721, %v736
      %v738 = vsel %vm732, %v735, %v737
      %v739 = vsel %vm731, %v718, %v721
      %v740 = vsel %vm734, %v727, 920167782
      %v741 = vsel %vm733, %v724, %v740
      %v742 = vsel %vm732, %v739, %v741
      %v743 = vsel %vm731, %v721, %v724
      %v744 = vsel %vm734, %v730, 1326507024
      %v745 = vsel %vm733, %v727, %v744
      %v746 = vsel %vm732, %v743, %v745
      %v747 = vshll.u32 %v707, 8
      %v748 = vand.u32 %v747, 65535
      %v749 = vshrl.u32 %v747, 16
      %v750 = vand.u32 %v746, 65535
      %v751 = vshrl.u32 %v746, 16
      %v752 = vmul.u32 %v748, %v750
      %v753 = vmul.u32 %v748, %v751
      %v754 = vmul.u32 %v749, %v750
      %v755 = vmul.u32 %v749, %v751
      %v756 = vshll.u32 %v753, 16
      %v757 = vshrl.u32 %v753, 16
      %v758 = vshll.u32 %v754, 16
      %v759 = vshrl.u32 %v754, 16
      %vm760 = vc.u32 %v752, %v756
      %v761 = vsel %vm760, 1, 0
      %v762 = vadd.s32 %v752, %v756
      %v763 = vadd.s32 %v755, %v761
      %vm764 = vc.u32 %v762, %v758
      %v765 = vsel %vm764, 1, 0
      %v766 = vadd.s32 %v762, %v758
      %v767 = vadd.s32 %v763, %v765
      %v768 = vadd.s32 %v767, %v757
      %v769 = vadd.s32 %v768, %v759
      %v770 = vand.u32 %v747, 65535
      %v771 = vshrl.u32 %v747, 16
      %v772 = vand.u32 %v742, 65535
      %v773 = vshrl.u32 %v742, 16
      %v774 = vmul.u32 %v770, %v772
      %v775 = vmul.u32 %v770, %v773
      %v776 = vmul.u32 %v771, %v772
      %v777 = vmul.u32 %v771, %v773
      %v778 = vshll.u32 %v775, 16
      %v779 = vshrl.u32 %v775, 16
      %v780 = vshll.u32 %v776, 16
      %v781 = vshrl.u32 %v776, 16
      %vm782 = vc.u32 %v774, %v778
      %v783 = vsel %vm782, 1, 0
      %v784 = vadd.s32 %v774, %v778
      %v785 = vadd.s32 %v777, %v783
      %vm786 = vc.u32 %v784, %v780
      %v787 = vsel %vm786, 1, 0
      %v788 = vadd.s32 %v784, %v780
      %v789 = vadd.s32 %v785, %v787
      %v790 = vadd.s32 %v789, %v779
      %v791 = vadd.s32 %v790, %v781
      %v792 = vmul.u32 %v747, %v738
      %v793 = vadd.s32 %v769, %v788
      %vm794 = vc.u32 %v769, %v788
      %v795 = vadd.s32 %v791, 1
      %v796 = vsel %vm794, %v795, %v791
      %v797 = vadd.s32 %v792, %v796
      %v798 = vadd.s32 %v797, 536870912
      %v799 = vshrl.u32 %v798, 30
      %v800 = vshll.u32 %v799, 30
      %v801 = vsub.s32 %v797, %v800
      %vm802 = vcmp.lt.s32.totalorder %v801, 0
      %v803 = vsub.s32 0, %v801
      %v804 = vsel %vm802, %v803, %v801
      %v805 = vclz %v804
      %v806 = vsub.s32 %v805, 2
      %vm807 = vcmp.gt.s32.totalorder 0, %v806
      %v808 = vsel %vm807, 0, %v806
      %v809 = vsub.s32 32, %v808
      %v810 = vshll.u32 %v801, %v808
      %v811 = vshrl.u32 %v793, %v809
      %v812 = vor.u32 %v810, %v811
      %v813 = vsub.s32 4294967266, %v808
      %v814 = vadd.s32 %v813, 127
      %v815 = vshll.u32 %v814, 23
      %v816 = vor.u32 4788187, %v815
      %v817 = vand.u32 2147483647, %v816
      %v819 = vcvt.s32.f32 %v812
      %v820 = vmul.f32 %v819, %v817
      %v821 = vxor.u32 %v820, 2147483648
      %v822 = vsel %vm701, %v821, %v820
      %v823 = vsub.s32 4, %v799
      %v824 = vsel %vm701, %v823, %v799
      %v825 = vsel %vm700, %v518, %v822
      %v826 = vsel %vm700, 0, %v824
      %v827 = vmul.f32 %v825, %v825
      %v828 = vmul.f32 %v827, -0.001358992
      %v829 = vadd.f32 %v828, 0.041655596
      %v830 = vmul.f32 %v827, %v829
      %v831 = vadd.f32 %v830, -0.4999988
      %v832 = vmul.f32 %v827, %v831
      %v833 = vadd.f32 1.0, %v832
      %v834 = vmul.f32 %v825, %v825
      %v835 = vmul.f32 %v834, -0.00019511016
      %v836 = vadd.f32 %v835, 0.008332121
      %v837 = vmul.f32 %v834, %v836
      %v838 = vadd.f32 %v837, -0.16666654
      %v839 = vmul.f32 %v834, %v838
      %v840 = vadd.f32 %v839, 1.0
      %v841 = vmul.f32 %v840, %v825
      %vm842 = vweird.f32 %v518
      %v843 = vadd.s32 %v826, 3
      %v844 = vand.u32 %v843, 3
      %vm845 = vcmp.lt.s32.totalorder %v844, 2
      %vm846 = vcmp.eq.s32.totalorder %v844, 0
      %v847 = vxor.u32 %v841, 2147483648
      %v848 = vsel %vm846, %v833, %v847
      %vm849 = vcmp.eq.s32.totalorder %v844, 2
      %v850 = vxor.u32 %v833, 2147483648
      %v851 = vsel %vm849, %v850, %v841
      %v852 = vsel %vm845, %v848, %v851
      %v853 = vsel %vm842, nan, %v852
      %v854 = vand.u32 2147483647, %v522
      %vm855 = vcmp.le.f32.partialorder %v854, 0.7853982
      %vm856 = vcmp.lt.s32.totalorder %v522, 0
      %v857 = vand.u32 %v522, 2139095040
      %v858 = vshrl.u32 %v857, 23
      %v859 = vsub.s32 %v858, 127
      %v860 = vand.u32 2147483647, %v522
      %v861 = vand.u32 %v860, 8388607
      %v862 = vor.u32 %v861, 8388608
      %v863 = vsub.s32 0, %v862
      %v864 = vadd.s32 %v859, 1
      %vm865 = vcmp.gt.s32.totalorder %v864, 0
      %v866 = vsel %vm865, %v864, 0
      %v867 = vshrl.u32 %v866, 5
      %v868 = vand.u32 %v866, 31
      %v869 = vsub.s32 32, %v868
      %v870 = vshrl.u32 683565275, %v869
      %v871 = vshll.u32 683565275, %v868
      %v872 = vshrl.u32 2475754826, %v869
      %v873 = vor.u32 %v871, %v872
      %v874 = vshll.u32 2475754826, %v868
      %v875 = vshrl.u32 2131351028, %v869
      %v876 = vor.u32 %v874, %v875
      %v877 = vshll.u32 2131351028, %v868
      %v878 = vshrl.u32 2102212464, %v869
      %v879 = vor.u32 %v877, %v878
      %v880 = vshll.u32 2102212464, %v868
      %v881 = vshrl.u32 920167782, %v869
      %v882 = vor.u32 %v880, %v881
      %v883 = vshll.u32 920167782, %v868
      %v884 = vshrl.u32 1326507024, %v869
      %v885 = vor.u32 %v883, %v884
      %vm886 = vcmp.lt.s32.totalorder %v867, 1
      %vm887 = vcmp.lt.s32.totalorder %v867, 2
      %vm888 = vcmp.lt.s32.totalorder %v867, 3
      %vm889 = vcmp.lt.s32.totalorder %v867, 4
      %v890 = vsel %vm886, %v870, %v873
      %v891 = vsel %vm889, %v879, 2102212464
      %v892 = vsel %vm888, %v876, %v891
      %v893 = vsel %vm887, %v890, %v892
      %v894 = vsel %vm886, %v873, %v876
      %v895 = vsel %vm889, %v882, 920167782
      %v896 = vsel %vm888, %v879, %v895
      %v897 = vsel %vm887, %v894, %v896
      %v898 = vsel %vm886, %v876, %v879
      %v899 = vsel %vm889, %v885, 1326507024
      %v900 = vsel %vm888, %v882, %v899
      %v901 = vsel %vm887, %v898, %v900
      %v902 = vshll.u32 %v862, 8
      %v903 = vand.u32 %v902, 65535
      %v904 = vshrl.u32 %v902, 16
      %v905 = vand.u32 %v901, 65535
      %v906 = vshrl.u32 %v901, 16
      %v907 = vmul.u32 %v903, %v905
      %v908 = vmul.u32 %v903, %v906
      %v909 = vmul.u32 %v904, %v905
      %v910 = vmul.u32 %v904, %v906
      %v911 = vshll.u32 %v908, 16
      %v912 = vshrl.u32 %v908, 16
      %v913 = vshll.u32 %v909, 16
      %v914 = vshrl.u32 %v909, 16
      %vm915 = vc.u32 %v907, %v911
      %v916 = vsel %vm915, 1, 0
      %v917 = vadd.s32 %v907, %v911
      %v918 = vadd.s32 %v910, %v916
      %vm919 = vc.u32 %v917, %v913
      %v920 = vsel %vm919, 1, 0
      %v921 = vadd.s32 %v917, %v913
      %v922 = vadd.s32 %v918, %v920
      %v923 = vadd.s32 %v922, %v912
      %v924 = vadd.s32 %v923, %v914
      %v925 = vand.u32 %v902, 65535
      %v926 = vshrl.u32 %v902, 16
      %v927 = vand.u32 %v897, 65535
      %v928 = vshrl.u32 %v897, 16
      %v929 = vmul.u32 %v925, %v927
      %v930 = vmul.u32 %v925, %v928
      %v931 = vmul.u32 %v926, %v927
      %v932 = vmul.u32 %v926, %v928
      %v933 = vshll.u32 %v930, 16
      %v934 = vshrl.u32 %v930, 16
      %v935 = vshll.u32 %v931, 16
      %v936 = vshrl.u32 %v931, 16
      %vm937 = vc.u32 %v929, %v933
      %v938 = vsel %vm937, 1, 0
      %v939 = vadd.s32 %v929, %v933
      %v940 = vadd.s32 %v932, %v938
      %vm941 = vc.u32 %v939, %v935
      %v942 = vsel %vm941, 1, 0
      %v943 = vadd.s32 %v939, %v935
      %v944 = vadd.s32 %v940, %v942
      %v945 = vadd.s32 %v944, %v934
      %v946 = vadd.s32 %v945, %v936
      %v947 = vmul.u32 %v902, %v893
      %v948 = vadd.s32 %v924, %v943
      %vm949 = vc.u32 %v924, %v943
      %v950 = vadd.s32 %v946, 1
      %v951 = vsel %vm949, %v950, %v946
      %v952 = vadd.s32 %v947, %v951
      %v953 = vadd.s32 %v952, 536870912
      %v954 = vshrl.u32 %v953, 30
      %v955 = vshll.u32 %v954, 30
      %v956 = vsub.s32 %v952, %v955
      %vm957 = vcmp.lt.s32.totalorder %v956, 0
      %v958 = vsub.s32 0, %v956
      %v959 = vsel %vm957, %v958, %v956
      %v960 = vclz %v959
      %v961 = vsub.s32 %v960, 2
      %vm962 = vcmp.gt.s32.totalorder 0, %v961
      %v963 = vsel %vm962, 0, %v961
      %v964 = vsub.s32 32, %v963
      %v965 = vshll.u32 %v956, %v963
      %v966 = vshrl.u32 %v948, %v964
      %v967 = vor.u32 %v965, %v966
      %v968 = vsub.s32 4294967266, %v963
      %v969 = vadd.s32 %v968, 127
      %v970 = vshll.u32 %v969, 23
      %v971 = vor.u32 4788187, %v970
      %v972 = vand.u32 2147483647, %v971
      %v974 = vcvt.s32.f32 %v967
      %v975 = vmul.f32 %v974, %v972
      %v976 = vxor.u32 %v975, 2147483648
      %v977 = vsel %vm856, %v976, %v975
      %v978 = vsub.s32 4, %v954
      %v979 = vsel %vm856, %v978, %v954
      %v980 = vsel %vm855, %v522, %v977
      %v981 = vsel %vm855, 0, %v979
      %v982 = vmul.f32 %v980, %v980
      %v983 = vmul.f32 %v982, -0.001358992
      %v984 = vadd.f32 %v983, 0.041655596
      %v985 = vmul.f32 %v982, %v984
      %v986 = vadd.f32 %v985, -0.4999988
      %v987 = vmul.f32 %v982, %v986
      %v988 = vadd.f32 1.0, %v987
      %v989 = vmul.f32 %v980, %v980
      %v990 = vmul.f32 %v989, -0.00019511016
      %v991 = vadd.f32 %v990, 0.008332121
      %v992 = vmul.f32 %v989, %v991
      %v993 = vadd.f32 %v992, -0.16666654
      %v994 = vmul.f32 %v989, %v993
      %v995 = vadd.f32 %v994, 1.0
      %v996 = vmul.f32 %v995, %v980
      %vm997 = vweird.f32 %v522
      %v998 = vadd.s32 %v981, 3
      %v999 = vand.u32 %v998, 3
      %vm1000 = vcmp.lt.s32.totalorder %v999, 2
      %vm1001 = vcmp.eq.s32.totalorder %v999, 0
      %v1002 = vxor.u32 %v996, 2147483648
      %v1003 = vsel %vm1001, %v988, %v1002
      %vm1004 = vcmp.eq.s32.totalorder %v999, 2
      %v1005 = vxor.u32 %v988, 2147483648
      %v1006 = vsel %vm1004, %v1005, %v996
      %v1007 = vsel %vm1000, %v1003, %v1006
      %v1008 = vsel %vm997, nan, %v1007
      %v1009 = vand.u32 2147483647, %v526
      %vm1010 = vcmp.le.f32.partialorder %v1009, 0.7853982
      %vm1011 = vcmp.lt.s32.totalorder %v526, 0
      %v1012 = vand.u32 %v526, 2139095040
      %v1013 = vshrl.u32 %v1012, 23
      %v1014 = vsub.s32 %v1013, 127
      %v1015 = vand.u32 2147483647, %v526
      %v1016 = vand.u32 %v1015, 8388607
      %v1017 = vor.u32 %v1016, 8388608
      %v1018 = vsub.s32 0, %v1017
      %v1019 = vadd.s32 %v1014, 1
      %vm1020 = vcmp.gt.s32.totalorder %v1019, 0
      %v1021 = vsel %vm1020, %v1019, 0
      %v1022 = vshrl.u32 %v1021, 5
      %v1023 = vand.u32 %v1021, 31
      %v1024 = vsub.s32 32, %v1023
      %v1025 = vshrl.u32 683565275, %v1024
      %v1026 = vshll.u32 683565275, %v1023
      %v1027 = vshrl.u32 2475754826, %v1024
      %v1028 = vor.u32 %v1026, %v1027
      %v1029 = vshll.u32 2475754826, %v1023
      %v1030 = vshrl.u32 2131351028, %v1024
      %v1031 = vor.u32 %v1029, %v1030
      %v1032 = vshll.u32 2131351028, %v1023
      %v1033 = vshrl.u32 2102212464, %v1024
      %v1034 = vor.u32 %v1032, %v1033
      %v1035 = vshll.u32 2102212464, %v1023
      %v1036 = vshrl.u32 920167782, %v1024
      %v1037 = vor.u32 %v1035, %v1036
      %v1038 = vshll.u32 920167782, %v1023
      %v1039 = vshrl.u32 1326507024, %v1024
      %v1040 = vor.u32 %v1038, %v1039
      %vm1041 = vcmp.lt.s32.totalorder %v1022, 1
      %vm1042 = vcmp.lt.s32.totalorder %v1022, 2
      %vm1043 = vcmp.lt.s32.totalorder %v1022, 3
      %vm1044 = vcmp.lt.s32.totalorder %v1022, 4
      %v1045 = vsel %vm1041, %v1025, %v1028
      %v1046 = vsel %vm1044, %v1034, 2102212464
      %v1047 = vsel %vm1043, %v1031, %v1046
      %v1048 = vsel %vm1042, %v1045, %v1047
      %v1049 = vsel %vm1041, %v1028, %v1031
      %v1050 = vsel %vm1044, %v1037, 920167782
      %v1051 = vsel %vm1043, %v1034, %v1050
      %v1052 = vsel %vm1042, %v1049, %v1051
      %v1053 = vsel %vm1041, %v1031, %v1034
      %v1054 = vsel %vm1044, %v1040, 1326507024
      %v1055 = vsel %vm1043, %v1037, %v1054
      %v1056 = vsel %vm1042, %v1053, %v1055
      %v1057 = vshll.u32 %v1017, 8
      %v1058 = vand.u32 %v1057, 65535
      %v1059 = vshrl.u32 %v1057, 16
      %v1060 = vand.u32 %v1056, 65535
      %v1061 = vshrl.u32 %v1056, 16
      %v1062 = vmul.u32 %v1058, %v1060
      %v1063 = vmul.u32 %v1058, %v1061
      %v1064 = vmul.u32 %v1059, %v1060
      %v1065 = vmul.u32 %v1059, %v1061
      %v1066 = vshll.u32 %v1063, 16
      %v1067 = vshrl.u32 %v1063, 16
      %v1068 = vshll.u32 %v1064, 16
      %v1069 = vshrl.u32 %v1064, 16
      %vm1070 = vc.u32 %v1062, %v1066
      %v1071 = vsel %vm1070, 1, 0
      %v1072 = vadd.s32 %v1062, %v1066
      %v1073 = vadd.s32 %v1065, %v1071
      %vm1074 = vc.u32 %v1072, %v1068
      %v1075 = vsel %vm1074, 1, 0
      %v1076 = vadd.s32 %v1072, %v1068
      %v1077 = vadd.s32 %v1073, %v1075
      %v1078 = vadd.s32 %v1077, %v1067
      %v1079 = vadd.s32 %v1078, %v1069
      %v1080 = vand.u32 %v1057, 65535
      %v1081 = vshrl.u32 %v1057, 16
      %v1082 = vand.u32 %v1052, 65535
      %v1083 = vshrl.u32 %v1052, 16
      %v1084 = vmul.u32 %v1080, %v1082
      %v1085 = vmul.u32 %v1080, %v1083
      %v1086 = vmul.u32 %v1081, %v1082
      %v1087 = vmul.u32 %v1081, %v1083
      %v1088 = vshll.u32 %v1085, 16
      %v1089 = vshrl.u32 %v1085, 16
      %v1090 = vshll.u32 %v1086, 16
      %v1091 = vshrl.u32 %v1086, 16
      %vm1092 = vc.u32 %v1084, %v1088
      %v1093 = vsel %vm1092, 1, 0
      %v1094 = vadd.s32 %v1084, %v1088
      %v1095 = vadd.s32 %v1087, %v1093
      %vm1096 = vc.u32 %v1094, %v1090
      %v1097 = vsel %vm1096, 1, 0
      %v1098 = vadd.s32 %v1094, %v1090
      %v1099 = vadd.s32 %v1095, %v1097
      %v1100 = vadd.s32 %v1099, %v1089
      %v1101 = vadd.s32 %v1100, %v1091
      %v1102 = vmul.u32 %v1057, %v1048
      %v1103 = vadd.s32 %v1079, %v1098
      %vm1104 = vc.u32 %v1079, %v1098
      %v1105 = vadd.s32 %v1101, 1
      %v1106 = vsel %vm1104, %v1105, %v1101
      %v1107 = vadd.s32 %v1102, %v1106
      %v1108 = vadd.s32 %v1107, 536870912
      %v1109 = vshrl.u32 %v1108, 30
      %v1110 = vshll.u32 %v1109, 30
      %v1111 = vsub.s32 %v1107, %v1110
      %vm1112 = vcmp.lt.s32.totalorder %v1111, 0
      %v1113 = vsub.s32 0, %v1111
      %v1114 = vsel %vm1112, %v1113, %v1111
      %v1115 = vclz %v1114
      %v1116 = vsub.s32 %v1115, 2
      %vm1117 = vcmp.gt.s32.totalorder 0, %v1116
      %v1118 = vsel %vm1117, 0, %v1116
      %v1119 = vsub.s32 32, %v1118
      %v1120 = vshll.u32 %v1111, %v1118
      %v1121 = vshrl.u32 %v1103, %v1119
      %v1122 = vor.u32 %v1120, %v1121
      %v1123 = vsub.s32 4294967266, %v1118
      %v1124 = vadd.s32 %v1123, 127
      %v1125 = vshll.u32 %v1124, 23
      %v1126 = vor.u32 4788187, %v1125
      %v1127 = vand.u32 2147483647, %v1126
      %v1129 = vcvt.s32.f32 %v1122
      %v1130 = vmul.f32 %v1129, %v1127
      %v1131 = vxor.u32 %v1130, 2147483648
      %v1132 = vsel %vm1011, %v1131, %v1130
      %v1133 = vsub.s32 4, %v1109
      %v1134 = vsel %vm1011, %v1133, %v1109
      %v1135 = vsel %vm1010, %v526, %v1132
      %v1136 = vsel %vm1010, 0, %v1134
      %v1137 = vmul.f32 %v1135, %v1135
      %v1138 = vmul.f32 %v1137, -0.001358992
      %v1139 = vadd.f32 %v1138, 0.041655596
      %v1140 = vmul.f32 %v1137, %v1139
      %v1141 = vadd.f32 %v1140, -0.4999988
      %v1142 = vmul.f32 %v1137, %v1141
      %v1143 = vadd.f32 1.0, %v1142
      %v1144 = vmul.f32 %v1135, %v1135
      %v1145 = vmul.f32 %v1144, -0.00019511016
      %v1146 = vadd.f32 %v1145, 0.008332121
      %v1147 = vmul.f32 %v1144, %v1146
      %v1148 = vadd.f32 %v1147, -0.16666654
      %v1149 = vmul.f32 %v1144, %v1148
      %v1150 = vadd.f32 %v1149, 1.0
      %v1151 = vmul.f32 %v1150, %v1135
      %vm1152 = vweird.f32 %v526
      %v1153 = vadd.s32 %v1136, 3
      %v1154 = vand.u32 %v1153, 3
      %vm1155 = vcmp.lt.s32.totalorder %v1154, 2
      %vm1156 = vcmp.eq.s32.totalorder %v1154, 0
      %v1157 = vxor.u32 %v1151, 2147483648
      %v1158 = vsel %vm1156, %v1143, %v1157
      %vm1159 = vcmp.eq.s32.totalorder %v1154, 2
      %v1160 = vxor.u32 %v1143, 2147483648
      %v1161 = vsel %vm1159, %v1160, %v1151
      %v1162 = vsel %vm1155, %v1158, %v1161
      %v1163 = vsel %vm1152, nan, %v1162
      %v1164 = vand.u32 2147483647, %v530
      %vm1165 = vcmp.le.f32.partialorder %v1164, 0.7853982
      %vm1166 = vcmp.lt.s32.totalorder %v530, 0
      %v1167 = vand.u32 %v530, 2139095040
      %v1168 = vshrl.u32 %v1167, 23
      %v1169 = vsub.s32 %v1168, 127
      %v1170 = vand.u32 2147483647, %v530
      %v1171 = vand.u32 %v1170, 8388607
      %v1172 = vor.u32 %v1171, 8388608
      %v1173 = vsub.s32 0, %v1172
      %v1174 = vadd.s32 %v1169, 1
      %vm1175 = vcmp.gt.s32.totalorder %v1174, 0
      %v1176 = vsel %vm1175, %v1174, 0
      %v1177 = vshrl.u32 %v1176, 5
      %v1178 = vand.u32 %v1176, 31
      %v1179 = vsub.s32 32, %v1178
      %v1180 = vshrl.u32 683565275, %v1179
      %v1181 = vshll.u32 683565275, %v1178
      %v1182 = vshrl.u32 2475754826, %v1179
      %v1183 = vor.u32 %v1181, %v1182
      %v1184 = vshll.u32 2475754826, %v1178
      %v1185 = vshrl.u32 2131351028, %v1179
      %v1186 = vor.u32 %v1184, %v1185
      %v1187 = vshll.u32 2131351028, %v1178
      %v1188 = vshrl.u32 2102212464, %v1179
      %v1189 = vor.u32 %v1187, %v1188
      %v1190 = vshll.u32 2102212464, %v1178
      %v1191 = vshrl.u32 920167782, %v1179
      %v1192 = vor.u32 %v1190, %v1191
      %v1193 = vshll.u32 920167782, %v1178
      %v1194 = vshrl.u32 1326507024, %v1179
      %v1195 = vor.u32 %v1193, %v1194
      %vm1196 = vcmp.lt.s32.totalorder %v1177, 1
      %vm1197 = vcmp.lt.s32.totalorder %v1177, 2
      %vm1198 = vcmp.lt.s32.totalorder %v1177, 3
      %vm1199 = vcmp.lt.s32.totalorder %v1177, 4
      %v1200 = vsel %vm1196, %v1180, %v1183
      %v1201 = vsel %vm1199, %v1189, 2102212464
      %v1202 = vsel %vm1198, %v1186, %v1201
      %v1203 = vsel %vm1197, %v1200, %v1202
      %v1204 = vsel %vm1196, %v1183, %v1186
      %v1205 = vsel %vm1199, %v1192, 920167782
      %v1206 = vsel %vm1198, %v1189, %v1205
      %v1207 = vsel %vm1197, %v1204, %v1206
      %v1208 = vsel %vm1196, %v1186, %v1189
      %v1209 = vsel %vm1199, %v1195, 1326507024
      %v1210 = vsel %vm1198, %v1192, %v1209
      %v1211 = vsel %vm1197, %v1208, %v1210
      %v1212 = vshll.u32 %v1172, 8
      %v1213 = vand.u32 %v1212, 65535
      %v1214 = vshrl.u32 %v1212, 16
      %v1215 = vand.u32 %v1211, 65535
      %v1216 = vshrl.u32 %v1211, 16
      %v1217 = vmul.u32 %v1213, %v1215
      %v1218 = vmul.u32 %v1213, %v1216
      %v1219 = vmul.u32 %v1214, %v1215
      %v1220 = vmul.u32 %v1214, %v1216
      %v1221 = vshll.u32 %v1218, 16
      %v1222 = vshrl.u32 %v1218, 16
      %v1223 = vshll.u32 %v1219, 16
      %v1224 = vshrl.u32 %v1219, 16
      %vm1225 = vc.u32 %v1217, %v1221
      %v1226 = vsel %vm1225, 1, 0
      %v1227 = vadd.s32 %v1217, %v1221
      %v1228 = vadd.s32 %v1220, %v1226
      %vm1229 = vc.u32 %v1227, %v1223
      %v1230 = vsel %vm1229, 1, 0
      %v1231 = vadd.s32 %v1227, %v1223
      %v1232 = vadd.s32 %v1228, %v1230
      %v1233 = vadd.s32 %v1232, %v1222
      %v1234 = vadd.s32 %v1233, %v1224
      %v1235 = vand.u32 %v1212, 65535
      %v1236 = vshrl.u32 %v1212, 16
      %v1237 = vand.u32 %v1207, 65535
      %v1238 = vshrl.u32 %v1207, 16
      %v1239 = vmul.u32 %v1235, %v1237
      %v1240 = vmul.u32 %v1235, %v1238
      %v1241 = vmul.u32 %v1236, %v1237
      %v1242 = vmul.u32 %v1236, %v1238
      %v1243 = vshll.u32 %v1240, 16
      %v1244 = vshrl.u32 %v1240, 16
      %v1245 = vshll.u32 %v1241, 16
      %v1246 = vshrl.u32 %v1241, 16
      %vm1247 = vc.u32 %v1239, %v1243
      %v1248 = vsel %vm1247, 1, 0
      %v1249 = vadd.s32 %v1239, %v1243
      %v1250 = vadd.s32 %v1242, %v1248
      %vm1251 = vc.u32 %v1249, %v1245
      %v1252 = vsel %vm1251, 1, 0
      %v1253 = vadd.s32 %v1249, %v1245
      %v1254 = vadd.s32 %v1250, %v1252
      %v1255 = vadd.s32 %v1254, %v1244
      %v1256 = vadd.s32 %v1255, %v1246
      %v1257 = vmul.u32 %v1212, %v1203
      %v1258 = vadd.s32 %v1234, %v1253
      %vm1259 = vc.u32 %v1234, %v1253
      %v1260 = vadd.s32 %v1256, 1
      %v1261 = vsel %vm1259, %v1260, %v1256
      %v1262 = vadd.s32 %v1257, %v1261
      %v1263 = vadd.s32 %v1262, 536870912
      %v1264 = vshrl.u32 %v1263, 30
      %v1265 = vshll.u32 %v1264, 30
      %v1266 = vsub.s32 %v1262, %v1265
      %vm1267 = vcmp.lt.s32.totalorder %v1266, 0
      %v1268 = vsub.s32 0, %v1266
      %v1269 = vsel %vm1267, %v1268, %v1266
      %v1270 = vclz %v1269
      %v1271 = vsub.s32 %v1270, 2
      %vm1272 = vcmp.gt.s32.totalorder 0, %v1271
      %v1273 = vsel %vm1272, 0, %v1271
      %v1274 = vsub.s32 32, %v1273
      %v1275 = vshll.u32 %v1266, %v1273
      %v1276 = vshrl.u32 %v1258, %v1274
      %v1277 = vor.u32 %v1275, %v1276
      %v1278 = vsub.s32 4294967266, %v1273
      %v1279 = vadd.s32 %v1278, 127
      %v1280 = vshll.u32 %v1279, 23
      %v1281 = vor.u32 4788187, %v1280
      %v1282 = vand.u32 2147483647, %v1281
      %v1284 = vcvt.s32.f32 %v1277
      %v1285 = vmul.f32 %v1284, %v1282
      %v1286 = vxor.u32 %v1285, 2147483648
      %v1287 = vsel %vm1166, %v1286, %v1285
      %v1288 = vsub.s32 4, %v1264
      %v1289 = vsel %vm1166, %v1288, %v1264
      %v1290 = vsel %vm1165, %v530, %v1287
      %v1291 = vsel %vm1165, 0, %v1289
      %v1292 = vmul.f32 %v1290, %v1290
      %v1293 = vmul.f32 %v1292, -0.001358992
      %v1294 = vadd.f32 %v1293, 0.041655596
      %v1295 = vmul.f32 %v1292, %v1294
      %v1296 = vadd.f32 %v1295, -0.4999988
      %v1297 = vmul.f32 %v1292, %v1296
      %v1298 = vadd.f32 1.0, %v1297
      %v1299 = vmul.f32 %v1290, %v1290
      %v1300 = vmul.f32 %v1299, -0.00019511016
      %v1301 = vadd.f32 %v1300, 0.008332121
      %v1302 = vmul.f32 %v1299, %v1301
      %v1303 = vadd.f32 %v1302, -0.16666654
      %v1304 = vmul.f32 %v1299, %v1303
      %v1305 = vadd.f32 %v1304, 1.0
      %v1306 = vmul.f32 %v1305, %v1290
      %vm1307 = vweird.f32 %v530
      %v1308 = vadd.s32 %v1291, 3
      %v1309 = vand.u32 %v1308, 3
      %vm1310 = vcmp.lt.s32.totalorder %v1309, 2
      %vm1311 = vcmp.eq.s32.totalorder %v1309, 0
      %v1312 = vxor.u32 %v1306, 2147483648
      %v1313 = vsel %vm1311, %v1298, %v1312
      %vm1314 = vcmp.eq.s32.totalorder %v1309, 2
      %v1315 = vxor.u32 %v1298, 2147483648
      %v1316 = vsel %vm1314, %v1315, %v1306
      %v1317 = vsel %vm1310, %v1313, %v1316
      %v1318 = vsel %vm1307, nan, %v1317
      %v1319 = vand.u32 2147483647, %v534
      %vm1320 = vcmp.le.f32.partialorder %v1319, 0.7853982
      %vm1321 = vcmp.lt.s32.totalorder %v534, 0
      %v1322 = vand.u32 %v534, 2139095040
      %v1323 = vshrl.u32 %v1322, 23
      %v1324 = vsub.s32 %v1323, 127
      %v1325 = vand.u32 2147483647, %v534
      %v1326 = vand.u32 %v1325, 8388607
      %v1327 = vor.u32 %v1326, 8388608
      %v1328 = vsub.s32 0, %v1327
      %v1329 = vadd.s32 %v1324, 1
      %vm1330 = vcmp.gt.s32.totalorder %v1329, 0
      %v1331 = vsel %vm1330, %v1329, 0
      %v1332 = vshrl.u32 %v1331, 5
      %v1333 = vand.u32 %v1331, 31
      %v1334 = vsub.s32 32, %v1333
      %v1335 = vshrl.u32 683565275, %v1334
      %v1336 = vshll.u32 683565275, %v1333
      %v1337 = vshrl.u32 2475754826, %v1334
      %v1338 = vor.u32 %v1336, %v1337
      %v1339 = vshll.u32 2475754826, %v1333
      %v1340 = vshrl.u32 2131351028, %v1334
      %v1341 = vor.u32 %v1339, %v1340
      %v1342 = vshll.u32 2131351028, %v1333
      %v1343 = vshrl.u32 2102212464, %v1334
      %v1344 = vor.u32 %v1342, %v1343
      %v1345 = vshll.u32 2102212464, %v1333
      %v1346 = vshrl.u32 920167782, %v1334
      %v1347 = vor.u32 %v1345, %v1346
      %v1348 = vshll.u32 920167782, %v1333
      %v1349 = vshrl.u32 1326507024, %v1334
      %v1350 = vor.u32 %v1348, %v1349
      %vm1351 = vcmp.lt.s32.totalorder %v1332, 1
      %vm1352 = vcmp.lt.s32.totalorder %v1332, 2
      %vm1353 = vcmp.lt.s32.totalorder %v1332, 3
      %vm1354 = vcmp.lt.s32.totalorder %v1332, 4
      %v1355 = vsel %vm1351, %v1335, %v1338
      %v1356 = vsel %vm1354, %v1344, 2102212464
      %v1357 = vsel %vm1353, %v1341, %v1356
      %v1358 = vsel %vm1352, %v1355, %v1357
      %v1359 = vsel %vm1351, %v1338, %v1341
      %v1360 = vsel %vm1354, %v1347, 920167782
      %v1361 = vsel %vm1353, %v1344, %v1360
      %v1362 = vsel %vm1352, %v1359, %v1361
      %v1363 = vsel %vm1351, %v1341, %v1344
      %v1364 = vsel %vm1354, %v1350, 1326507024
      %v1365 = vsel %vm1353, %v1347, %v1364
      %v1366 = vsel %vm1352, %v1363, %v1365
      %v1367 = vshll.u32 %v1327, 8
      %v1368 = vand.u32 %v1367, 65535
      %v1369 = vshrl.u32 %v1367, 16
      %v1370 = vand.u32 %v1366, 65535
      %v1371 = vshrl.u32 %v1366, 16
      %v1372 = vmul.u32 %v1368, %v1370
      %v1373 = vmul.u32 %v1368, %v1371
      %v1374 = vmul.u32 %v1369, %v1370
      %v1375 = vmul.u32 %v1369, %v1371
      %v1376 = vshll.u32 %v1373, 16
      %v1377 = vshrl.u32 %v1373, 16
      %v1378 = vshll.u32 %v1374, 16
      %v1379 = vshrl.u32 %v1374, 16
      %vm1380 = vc.u32 %v1372, %v1376
      %v1381 = vsel %vm1380, 1, 0
      %v1382 = vadd.s32 %v1372, %v1376
      %v1383 = vadd.s32 %v1375, %v1381
      %vm1384 = vc.u32 %v1382, %v1378
      %v1385 = vsel %vm1384, 1, 0
      %v1386 = vadd.s32 %v1382, %v1378
      %v1387 = vadd.s32 %v1383, %v1385
      %v1388 = vadd.s32 %v1387, %v1377
      %v1389 = vadd.s32 %v1388, %v1379
      %v1390 = vand.u32 %v1367, 65535
      %v1391 = vshrl.u32 %v1367, 16
      %v1392 = vand.u32 %v1362, 65535
      %v1393 = vshrl.u32 %v1362, 16
      %v1394 = vmul.u32 %v1390, %v1392
      %v1395 = vmul.u32 %v1390, %v1393
      %v1396 = vmul.u32 %v1391, %v1392
      %v1397 = vmul.u32 %v1391, %v1393
      %v1398 = vshll.u32 %v1395, 16
      %v1399 = vshrl.u32 %v1395, 16
      %v1400 = vshll.u32 %v1396, 16
      %v1401 = vshrl.u32 %v1396, 16
      %vm1402 = vc.u32 %v1394, %v1398
      %v1403 = vsel %vm1402, 1, 0
      %v1404 = vadd.s32 %v1394, %v1398
      %v1405 = vadd.s32 %v1397, %v1403
      %vm1406 = vc.u32 %v1404, %v1400
      %v1407 = vsel %vm1406, 1, 0
      %v1408 = vadd.s32 %v1404, %v1400
      %v1409 = vadd.s32 %v1405, %v1407
      %v1410 = vadd.s32 %v1409, %v1399
      %v1411 = vadd.s32 %v1410, %v1401
      %v1412 = vmul.u32 %v1367, %v1358
      %v1413 = vadd.s32 %v1389, %v1408
      %vm1414 = vc.u32 %v1389, %v1408
      %v1415 = vadd.s32 %v1411, 1
      %v1416 = vsel %vm1414, %v1415, %v1411
      %v1417 = vadd.s32 %v1412, %v1416
      %v1418 = vadd.s32 %v1417, 536870912
      %v1419 = vshrl.u32 %v1418, 30
      %v1420 = vshll.u32 %v1419, 30
      %v1421 = vsub.s32 %v1417, %v1420
      %vm1422 = vcmp.lt.s32.totalorder %v1421, 0
      %v1423 = vsub.s32 0, %v1421
      %v1424 = vsel %vm1422, %v1423, %v1421
      %v1425 = vclz %v1424
      %v1426 = vsub.s32 %v1425, 2
      %vm1427 = vcmp.gt.s32.totalorder 0, %v1426
      %v1428 = vsel %vm1427, 0, %v1426
      %v1429 = vsub.s32 32, %v1428
      %v1430 = vshll.u32 %v1421, %v1428
      %v1431 = vshrl.u32 %v1413, %v1429
      %v1432 = vor.u32 %v1430, %v1431
      %v1433 = vsub.s32 4294967266, %v1428
      %v1434 = vadd.s32 %v1433, 127
      %v1435 = vshll.u32 %v1434, 23
      %v1436 = vor.u32 4788187, %v1435
      %v1437 = vand.u32 2147483647, %v1436
      %v1439 = vcvt.s32.f32 %v1432
      %v1440 = vmul.f32 %v1439, %v1437
      %v1441 = vxor.u32 %v1440, 2147483648
      %v1442 = vsel %vm1321, %v1441, %v1440
      %v1443 = vsub.s32 4, %v1419
      %v1444 = vsel %vm1321, %v1443, %v1419
      %v1445 = vsel %vm1320, %v534, %v1442
      %v1446 = vsel %vm1320, 0, %v1444
      %v1447 = vmul.f32 %v1445, %v1445
      %v1448 = vmul.f32 %v1447, -0.001358992
      %v1449 = vadd.f32 %v1448, 0.041655596
      %v1450 = vmul.f32 %v1447, %v1449
      %v1451 = vadd.f32 %v1450, -0.4999988
      %v1452 = vmul.f32 %v1447, %v1451
      %v1453 = vadd.f32 1.0, %v1452
      %v1454 = vmul.f32 %v1445, %v1445
      %v1455 = vmul.f32 %v1454, -0.00019511016
      %v1456 = vadd.f32 %v1455, 0.008332121
      %v1457 = vmul.f32 %v1454, %v1456
      %v1458 = vadd.f32 %v1457, -0.16666654
      %v1459 = vmul.f32 %v1454, %v1458
      %v1460 = vadd.f32 %v1459, 1.0
      %v1461 = vmul.f32 %v1460, %v1445
      %vm1462 = vweird.f32 %v534
      %v1463 = vadd.s32 %v1446, 3
      %v1464 = vand.u32 %v1463, 3
      %vm1465 = vcmp.lt.s32.totalorder %v1464, 2
      %vm1466 = vcmp.eq.s32.totalorder %v1464, 0
      %v1467 = vxor.u32 %v1461, 2147483648
      %v1468 = vsel %vm1466, %v1453, %v1467
      %vm1469 = vcmp.eq.s32.totalorder %v1464, 2
      %v1470 = vxor.u32 %v1453, 2147483648
      %v1471 = vsel %vm1469, %v1470, %v1461
      %v1472 = vsel %vm1465, %v1468, %v1471
      %v1473 = vsel %vm1462, nan, %v1472
      %v1474 = vand.u32 2147483647, %v538
      %vm1475 = vcmp.le.f32.partialorder %v1474, 0.7853982
      %vm1476 = vcmp.lt.s32.totalorder %v538, 0
      %v1477 = vand.u32 %v538, 2139095040
      %v1478 = vshrl.u32 %v1477, 23
      %v1479 = vsub.s32 %v1478, 127
      %v1480 = vand.u32 2147483647, %v538
      %v1481 = vand.u32 %v1480, 8388607
      %v1482 = vor.u32 %v1481, 8388608
      %v1483 = vsub.s32 0, %v1482
      %v1484 = vadd.s32 %v1479, 1
      %vm1485 = vcmp.gt.s32.totalorder %v1484, 0
      %v1486 = vsel %vm1485, %v1484, 0
      %v1487 = vshrl.u32 %v1486, 5
      %v1488 = vand.u32 %v1486, 31
      %v1489 = vsub.s32 32, %v1488
      %v1490 = vshrl.u32 683565275, %v1489
      %v1491 = vshll.u32 683565275, %v1488
      %v1492 = vshrl.u32 2475754826, %v1489
      %v1493 = vor.u32 %v1491, %v1492
      %v1494 = vshll.u32 2475754826, %v1488
      %v1495 = vshrl.u32 2131351028, %v1489
      %v1496 = vor.u32 %v1494, %v1495
      %v1497 = vshll.u32 2131351028, %v1488
      %v1498 = vshrl.u32 2102212464, %v1489
      %v1499 = vor.u32 %v1497, %v1498
      %v1500 = vshll.u32 2102212464, %v1488
      %v1501 = vshrl.u32 920167782, %v1489
      %v1502 = vor.u32 %v1500, %v1501
      %v1503 = vshll.u32 920167782, %v1488
      %v1504 = vshrl.u32 1326507024, %v1489
      %v1505 = vor.u32 %v1503, %v1504
      %vm1506 = vcmp.lt.s32.totalorder %v1487, 1
      %vm1507 = vcmp.lt.s32.totalorder %v1487, 2
      %vm1508 = vcmp.lt.s32.totalorder %v1487, 3
      %vm1509 = vcmp.lt.s32.totalorder %v1487, 4
      %v1510 = vsel %vm1506, %v1490, %v1493
      %v1511 = vsel %vm1509, %v1499, 2102212464
      %v1512 = vsel %vm1508, %v1496, %v1511
      %v1513 = vsel %vm1507, %v1510, %v1512
      %v1514 = vsel %vm1506, %v1493, %v1496
      %v1515 = vsel %vm1509, %v1502, 920167782
      %v1516 = vsel %vm1508, %v1499, %v1515
      %v1517 = vsel %vm1507, %v1514, %v1516
      %v1518 = vsel %vm1506, %v1496, %v1499
      %v1519 = vsel %vm1509, %v1505, 1326507024
      %v1520 = vsel %vm1508, %v1502, %v1519
      %v1521 = vsel %vm1507, %v1518, %v1520
      %v1522 = vshll.u32 %v1482, 8
      %v1523 = vand.u32 %v1522, 65535
      %v1524 = vshrl.u32 %v1522, 16
      %v1525 = vand.u32 %v1521, 65535
      %v1526 = vshrl.u32 %v1521, 16
      %v1527 = vmul.u32 %v1523, %v1525
      %v1528 = vmul.u32 %v1523, %v1526
      %v1529 = vmul.u32 %v1524, %v1525
      %v1530 = vmul.u32 %v1524, %v1526
      %v1531 = vshll.u32 %v1528, 16
      %v1532 = vshrl.u32 %v1528, 16
      %v1533 = vshll.u32 %v1529, 16
      %v1534 = vshrl.u32 %v1529, 16
      %vm1535 = vc.u32 %v1527, %v1531
      %v1536 = vsel %vm1535, 1, 0
      %v1537 = vadd.s32 %v1527, %v1531
      %v1538 = vadd.s32 %v1530, %v1536
      %vm1539 = vc.u32 %v1537, %v1533
      %v1540 = vsel %vm1539, 1, 0
      %v1541 = vadd.s32 %v1537, %v1533
      %v1542 = vadd.s32 %v1538, %v1540
      %v1543 = vadd.s32 %v1542, %v1532
      %v1544 = vadd.s32 %v1543, %v1534
      %v1545 = vand.u32 %v1522, 65535
      %v1546 = vshrl.u32 %v1522, 16
      %v1547 = vand.u32 %v1517, 65535
      %v1548 = vshrl.u32 %v1517, 16
      %v1549 = vmul.u32 %v1545, %v1547
      %v1550 = vmul.u32 %v1545, %v1548
      %v1551 = vmul.u32 %v1546, %v1547
      %v1552 = vmul.u32 %v1546, %v1548
      %v1553 = vshll.u32 %v1550, 16
      %v1554 = vshrl.u32 %v1550, 16
      %v1555 = vshll.u32 %v1551, 16
      %v1556 = vshrl.u32 %v1551, 16
      %vm1557 = vc.u32 %v1549, %v1553
      %v1558 = vsel %vm1557, 1, 0
      %v1559 = vadd.s32 %v1549, %v1553
      %v1560 = vadd.s32 %v1552, %v1558
      %vm1561 = vc.u32 %v1559, %v1555
      %v1562 = vsel %vm1561, 1, 0
      %v1563 = vadd.s32 %v1559, %v1555
      %v1564 = vadd.s32 %v1560, %v1562
      %v1565 = vadd.s32 %v1564, %v1554
      %v1566 = vadd.s32 %v1565, %v1556
      %v1567 = vmul.u32 %v1522, %v1513
      %v1568 = vadd.s32 %v1544, %v1563
      %vm1569 = vc.u32 %v1544, %v1563
      %v1570 = vadd.s32 %v1566, 1
      %v1571 = vsel %vm1569, %v1570, %v1566
      %v1572 = vadd.s32 %v1567, %v1571
      %v1573 = vadd.s32 %v1572, 536870912
      %v1574 = vshrl.u32 %v1573, 30
      %v1575 = vshll.u32 %v1574, 30
      %v1576 = vsub.s32 %v1572, %v1575
      %vm1577 = vcmp.lt.s32.totalorder %v1576, 0
      %v1578 = vsub.s32 0, %v1576
      %v1579 = vsel %vm1577, %v1578, %v1576
      %v1580 = vclz %v1579
      %v1581 = vsub.s32 %v1580, 2
      %vm1582 = vcmp.gt.s32.totalorder 0, %v1581
      %v1583 = vsel %vm1582, 0, %v1581
      %v1584 = vsub.s32 32, %v1583
      %v1585 = vshll.u32 %v1576, %v1583
      %v1586 = vshrl.u32 %v1568, %v1584
      %v1587 = vor.u32 %v1585, %v1586
      %v1588 = vsub.s32 4294967266, %v1583
      %v1589 = vadd.s32 %v1588, 127
      %v1590 = vshll.u32 %v1589, 23
      %v1591 = vor.u32 4788187, %v1590
      %v1592 = vand.u32 2147483647, %v1591
      %v1594 = vcvt.s32.f32 %v1587
      %v1595 = vmul.f32 %v1594, %v1592
      %v1596 = vxor.u32 %v1595, 2147483648
      %v1597 = vsel %vm1476, %v1596, %v1595
      %v1598 = vsub.s32 4, %v1574
      %v1599 = vsel %vm1476, %v1598, %v1574
      %v1600 = vsel %vm1475, %v538, %v1597
      %v1601 = vsel %vm1475, 0, %v1599
      %v1602 = vmul.f32 %v1600, %v1600
      %v1603 = vmul.f32 %v1602, -0.001358992
      %v1604 = vadd.f32 %v1603, 0.041655596
      %v1605 = vmul.f32 %v1602, %v1604
      %v1606 = vadd.f32 %v1605, -0.4999988
      %v1607 = vmul.f32 %v1602, %v1606
      %v1608 = vadd.f32 1.0, %v1607
      %v1609 = vmul.f32 %v1600, %v1600
      %v1610 = vmul.f32 %v1609, -0.00019511016
      %v1611 = vadd.f32 %v1610, 0.008332121
      %v1612 = vmul.f32 %v1609, %v1611
      %v1613 = vadd.f32 %v1612, -0.16666654
      %v1614 = vmul.f32 %v1609, %v1613
      %v1615 = vadd.f32 %v1614, 1.0
      %v1616 = vmul.f32 %v1615, %v1600
      %vm1617 = vweird.f32 %v538
      %v1618 = vadd.s32 %v1601, 3
      %v1619 = vand.u32 %v1618, 3
      %vm1620 = vcmp.lt.s32.totalorder %v1619, 2
      %vm1621 = vcmp.eq.s32.totalorder %v1619, 0
      %v1622 = vxor.u32 %v1616, 2147483648
      %v1623 = vsel %vm1621, %v1608, %v1622
      %vm1624 = vcmp.eq.s32.totalorder %v1619, 2
      %v1625 = vxor.u32 %v1608, 2147483648
      %v1626 = vsel %vm1624, %v1625, %v1616
      %v1627 = vsel %vm1620, %v1623, %v1626
      %v1628 = vsel %vm1617, nan, %v1627
      %v1629 = vand.u32 2147483647, %v542
      %vm1630 = vcmp.le.f32.partialorder %v1629, 0.7853982
      %vm1631 = vcmp.lt.s32.totalorder %v542, 0
      %v1632 = vand.u32 %v542, 2139095040
      %v1633 = vshrl.u32 %v1632, 23
      %v1634 = vsub.s32 %v1633, 127
      %v1635 = vand.u32 2147483647, %v542
      %v1636 = vand.u32 %v1635, 8388607
      %v1637 = vor.u32 %v1636, 8388608
      %v1638 = vsub.s32 0, %v1637
      %v1639 = vadd.s32 %v1634, 1
      %vm1640 = vcmp.gt.s32.totalorder %v1639, 0
      %v1641 = vsel %vm1640, %v1639, 0
      %v1642 = vshrl.u32 %v1641, 5
      %v1643 = vand.u32 %v1641, 31
      %v1644 = vsub.s32 32, %v1643
      %v1645 = vshrl.u32 683565275, %v1644
      %v1646 = vshll.u32 683565275, %v1643
      %v1647 = vshrl.u32 2475754826, %v1644
      %v1648 = vor.u32 %v1646, %v1647
      %v1649 = vshll.u32 2475754826, %v1643
      %v1650 = vshrl.u32 2131351028, %v1644
      %v1651 = vor.u32 %v1649, %v1650
      %v1652 = vshll.u32 2131351028, %v1643
      %v1653 = vshrl.u32 2102212464, %v1644
      %v1654 = vor.u32 %v1652, %v1653
      %v1655 = vshll.u32 2102212464, %v1643
      %v1656 = vshrl.u32 920167782, %v1644
      %v1657 = vor.u32 %v1655, %v1656
      %v1658 = vshll.u32 920167782, %v1643
      %v1659 = vshrl.u32 1326507024, %v1644
      %v1660 = vor.u32 %v1658, %v1659
      %vm1661 = vcmp.lt.s32.totalorder %v1642, 1
      %vm1662 = vcmp.lt.s32.totalorder %v1642, 2
      %vm1663 = vcmp.lt.s32.totalorder %v1642, 3
      %vm1664 = vcmp.lt.s32.totalorder %v1642, 4
      %v1665 = vsel %vm1661, %v1645, %v1648
      %v1666 = vsel %vm1664, %v1654, 2102212464
      %v1667 = vsel %vm1663, %v1651, %v1666
      %v1668 = vsel %vm1662, %v1665, %v1667
      %v1669 = vsel %vm1661, %v1648, %v1651
      %v1670 = vsel %vm1664, %v1657, 920167782
      %v1671 = vsel %vm1663, %v1654, %v1670
      %v1672 = vsel %vm1662, %v1669, %v1671
      %v1673 = vsel %vm1661, %v1651, %v1654
      %v1674 = vsel %vm1664, %v1660, 1326507024
      %v1675 = vsel %vm1663, %v1657, %v1674
      %v1676 = vsel %vm1662, %v1673, %v1675
      %v1677 = vshll.u32 %v1637, 8
      %v1678 = vand.u32 %v1677, 65535
      %v1679 = vshrl.u32 %v1677, 16
      %v1680 = vand.u32 %v1676, 65535
      %v1681 = vshrl.u32 %v1676, 16
      %v1682 = vmul.u32 %v1678, %v1680
      %v1683 = vmul.u32 %v1678, %v1681
      %v1684 = vmul.u32 %v1679, %v1680
      %v1685 = vmul.u32 %v1679, %v1681
      %v1686 = vshll.u32 %v1683, 16
      %v1687 = vshrl.u32 %v1683, 16
      %v1688 = vshll.u32 %v1684, 16
      %v1689 = vshrl.u32 %v1684, 16
      %vm1690 = vc.u32 %v1682, %v1686
      %v1691 = vsel %vm1690, 1, 0
      %v1692 = vadd.s32 %v1682, %v1686
      %v1693 = vadd.s32 %v1685, %v1691
      %vm1694 = vc.u32 %v1692, %v1688
      %v1695 = vsel %vm1694, 1, 0
      %v1696 = vadd.s32 %v1692, %v1688
      %v1697 = vadd.s32 %v1693, %v1695
      %v1698 = vadd.s32 %v1697, %v1687
      %v1699 = vadd.s32 %v1698, %v1689
      %v1700 = vand.u32 %v1677, 65535
      %v1701 = vshrl.u32 %v1677, 16
      %v1702 = vand.u32 %v1672, 65535
      %v1703 = vshrl.u32 %v1672, 16
      %v1704 = vmul.u32 %v1700, %v1702
      %v1705 = vmul.u32 %v1700, %v1703
      %v1706 = vmul.u32 %v1701, %v1702
      %v1707 = vmul.u32 %v1701, %v1703
      %v1708 = vshll.u32 %v1705, 16
      %v1709 = vshrl.u32 %v1705, 16
      %v1710 = vshll.u32 %v1706, 16
      %v1711 = vshrl.u32 %v1706, 16
      %vm1712 = vc.u32 %v1704, %v1708
      %v1713 = vsel %vm1712, 1, 0
      %v1714 = vadd.s32 %v1704, %v1708
      %v1715 = vadd.s32 %v1707, %v1713
      %vm1716 = vc.u32 %v1714, %v1710
      %v1717 = vsel %vm1716, 1, 0
      %v1718 = vadd.s32 %v1714, %v1710
      %v1719 = vadd.s32 %v1715, %v1717
      %v1720 = vadd.s32 %v1719, %v1709
      %v1721 = vadd.s32 %v1720, %v1711
      %v1722 = vmul.u32 %v1677, %v1668
      %v1723 = vadd.s32 %v1699, %v1718
      %vm1724 = vc.u32 %v1699, %v1718
      %v1725 = vadd.s32 %v1721, 1
      %v1726 = vsel %vm1724, %v1725, %v1721
      %v1727 = vadd.s32 %v1722, %v1726
      %v1728 = vadd.s32 %v1727, 536870912
      %v1729 = vshrl.u32 %v1728, 30
      %v1730 = vshll.u32 %v1729, 30
      %v1731 = vsub.s32 %v1727, %v1730
      %vm1732 = vcmp.lt.s32.totalorder %v1731, 0
      %v1733 = vsub.s32 0, %v1731
      %v1734 = vsel %vm1732, %v1733, %v1731
      %v1735 = vclz %v1734
      %v1736 = vsub.s32 %v1735, 2
      %vm1737 = vcmp.gt.s32.totalorder 0, %v1736
      %v1738 = vsel %vm1737, 0, %v1736
      %v1739 = vsub.s32 32, %v1738
      %v1740 = vshll.u32 %v1731, %v1738
      %v1741 = vshrl.u32 %v1723, %v1739
      %v1742 = vor.u32 %v1740, %v1741
      %v1743 = vsub.s32 4294967266, %v1738
      %v1744 = vadd.s32 %v1743, 127
      %v1745 = vshll.u32 %v1744, 23
      %v1746 = vor.u32 4788187, %v1745
      %v1747 = vand.u32 2147483647, %v1746
      %v1749 = vcvt.s32.f32 %v1742
      %v1750 = vmul.f32 %v1749, %v1747
      %v1751 = vxor.u32 %v1750, 2147483648
      %v1752 = vsel %vm1631, %v1751, %v1750
      %v1753 = vsub.s32 4, %v1729
      %v1754 = vsel %vm1631, %v1753, %v1729
      %v1755 = vsel %vm1630, %v542, %v1752
      %v1756 = vsel %vm1630, 0, %v1754
      %v1757 = vmul.f32 %v1755, %v1755
      %v1758 = vmul.f32 %v1757, -0.001358992
      %v1759 = vadd.f32 %v1758, 0.041655596
      %v1760 = vmul.f32 %v1757, %v1759
      %v1761 = vadd.f32 %v1760, -0.4999988
      %v1762 = vmul.f32 %v1757, %v1761
      %v1763 = vadd.f32 1.0, %v1762
      %v1764 = vmul.f32 %v1755, %v1755
      %v1765 = vmul.f32 %v1764, -0.00019511016
      %v1766 = vadd.f32 %v1765, 0.008332121
      %v1767 = vmul.f32 %v1764, %v1766
      %v1768 = vadd.f32 %v1767, -0.16666654
      %v1769 = vmul.f32 %v1764, %v1768
      %v1770 = vadd.f32 %v1769, 1.0
      %v1771 = vmul.f32 %v1770, %v1755
      %vm1772 = vweird.f32 %v542
      %v1773 = vadd.s32 %v1756, 3
      %v1774 = vand.u32 %v1773, 3
      %vm1775 = vcmp.lt.s32.totalorder %v1774, 2
      %vm1776 = vcmp.eq.s32.totalorder %v1774, 0
      %v1777 = vxor.u32 %v1771, 2147483648
      %v1778 = vsel %vm1776, %v1763, %v1777
      %vm1779 = vcmp.eq.s32.totalorder %v1774, 2
      %v1780 = vxor.u32 %v1763, 2147483648
      %v1781 = vsel %vm1779, %v1780, %v1771
      %v1782 = vsel %vm1775, %v1778, %v1781
      %v1783 = vsel %vm1772, nan, %v1782
      %vm1784 = vcmask 785408
      %1785 = vst.msk [vmem:[%s145] sm:$0xff] %vm1784, %v698
      %1786 = vst.msk [vmem:[%s145 + $0x8] sm:$0xff] %vm1784, %v853
      %1787 = vst.msk [vmem:[%s145 + $0x10] sm:$0xff] %vm1784, %v1008
      %1788 = vst.msk [vmem:[%s145 + $0x18] sm:$0xff] %vm1784, %v1163
      %1789 = vst.msk [vmem:[%s145 + $0x20] sm:$0xff] %vm1784, %v1318
      %1790 = vst.msk [vmem:[%s145 + $0x28] sm:$0xff] %vm1784, %v1473
      %1791 = vst.msk [vmem:[%s145 + $0x30] sm:$0xff] %vm1784, %v1628
      %1792 = vst.msk [vmem:[%s145 + $0x38] sm:$0xff] %vm1784, %v1783
      %s1793 = smul.u32 8, %s13
      %p1794 = scmp.lt.s32.totalorder %s1793, 15
      %s1795 = scalar_select %p1794, %s1793, 15
      %s1796 = smul.addr %s1795, 8
      %s1797 = scalar_lea.vmem %s2, %s1796
      // Predicated region
      $region29: #{tpu_custom_call.1} parent=27 // pred_check
        %p1798 = pneg %p78
      $region30: #{tpu_custom_call.1} parent=27 // pred_check_branch
        %1800 = sbr.rel (%p1798) target = $region32
      $region31: #{tpu_custom_call.1} parent=27 // pred_region
        %s1801 = smul.u32 8, %s13
      $region32: #{tpu_custom_call.1} parent=27 // pred_fallthru
        _
    $region28: #{tpu_custom_call.1} parent=5 // pred_fallthru
      _
    %p1802 = scmp.le.s32.totalorder 2, %s8
    // Predicated region
    $region33: #{tpu_custom_call.1} parent=5 // pred_check
      %p1803 = pneg %p1802
    $region34: #{tpu_custom_call.1} parent=5 // pred_check_branch
      %1805 = sbr.rel (%p1803) target = $region36
    $region35: #{tpu_custom_call.1} parent=5 // pred_region
      %s1806 = ssub.s32 %s8, 2
      // Predicated region
      $region37: #{tpu_custom_call.1} parent=35 // pred_check
        %p1807 = pneg %p84
      $region38: #{tpu_custom_call.1} parent=35 // pred_check_branch
        %1809 = sbr.rel (%p1807) target = $region40
      $region39: #{tpu_custom_call.1} parent=35 // pred_region
        %s1810 = smul.u32 8, %s14
        %p1811 = scmp.lt.s32.totalorder %s1810, 15
        %s1812 = scalar_select %p1811, %s1810, 15
        %s1813 = smul.addr %s1812, 8
        %s1814 = scalar_lea.vmem %s2, %s1813
      $region40: #{tpu_custom_call.1} parent=35 // pred_fallthru
        _
    $region36: #{tpu_custom_call.1} parent=5 // pred_fallthru
      _
  $region6: #{tpu_custom_call.1} parent=0 // loop_footer
    %s12 = sadd.s32 1, %s8
  $region7: #{tpu_custom_call.1} parent=0 // loop_footer_branch
    %7 = sbr.rel target = $region3
  $region8: #{tpu_custom_call.1} parent=0 // loop_exit
    _

</llo_original>
